<compile_context>
chip_gen: v7x
topology: tpu7x:2x2x1
jax: 0.10.0
libtpu: 0.0.40
codegen_flags: <defaults>
</compile_context>

<pallas_src>
import jax
import jax.numpy as jnp
from jax import lax
from jax.experimental import pallas as pl
from jax.experimental.pallas import tpu as pltpu


# ---------------------------------------------------------------------------
# Hyper-parameters (mirror of the PyTorch Args class)
# ---------------------------------------------------------------------------
GNN_INPUT_DIM = 31      # args.gnn_input_dim
CNN_INPUT_DIM = 128     # args.cnn_input_dim
FC_DIM = LATENT_DIM = 32
CNN_DIM = CNN_LATENT_DIM = 32
OUT_DIM = 14 * 2        # 28
FC_OUT_DIM = 33
CNN_OUT_DIM = 11
HID_OUT_DIM = 33

CAT_IN_DIM = GNN_INPUT_DIM + CNN_INPUT_DIM      # 159
CAT_H0_DIM = FC_DIM + CNN_DIM                   # 64
CAT_H1_DIM = LATENT_DIM + CNN_LATENT_DIM        # 64
CAT_ENC_DIM = FC_OUT_DIM + CNN_OUT_DIM          # 44
OUT_PAD = 128                                   # lane-dense padded output


# ---------------------------------------------------------------------------
# Pallas kernel: one graph per grid step (everything VMEM-resident)
# ---------------------------------------------------------------------------
def snap_gnn_kernel(
    x_ref, acat_ref,
    w0_ref, b0_ref, w1_ref, b1_ref, w2_ref, b2_ref,
    wp1_ref, bp1_ref, wp2_ref, bp2_ref,
    out_ref,
):
    bf16 = jnp.bfloat16
    dot = lambda a, b: jnp.dot(a, b, preferred_element_type=jnp.float32)
    relu = lambda x: jnp.maximum(x, 0.0)

    x = x_ref[...]          # (N, 159)  bf16 = cat(feat, spat)
    acat = acat_ref[...]    # (N, 2N)   bf16 = [A_feat | A_spat]

    # ---- fused first Linear of both branches (block-diagonal weight) ----
    h0 = relu(dot(x, w0_ref[...]) + b0_ref[...])                   # (N, 64) f32

    # ---- GCN layer 1: fused inner matmul + fused propagation ----
    t1 = dot(h0.astype(bf16), w1_ref[...])                         # (N, 64) f32
    lanes1 = lax.broadcasted_iota(jnp.int32, t1.shape, 1)
    # Sublane-stack masked branch halves -> single (2N, 64) RHS so ONE
    # matmul against [A_feat | A_spat] does both branch propagations.
    stacked1 = jnp.concatenate(
        [jnp.where(lanes1 < FC_DIM, t1, 0.0),                       # feat half
         jnp.where(lanes1 >= FC_DIM, t1, 0.0)],                     # spat half
        axis=0).astype(bf16)                                        # (2N, 64)
    h1 = relu(dot(acat, stacked1) + b1_ref[...])                    # (N, 64) f32

    # ---- GCN layer 2: fused inner matmul + fused propagation ----
    t2 = dot(h1.astype(bf16), w2_ref[...])                          # (N, 44) f32
    lanes2 = lax.broadcasted_iota(jnp.int32, t2.shape, 1)
    stacked2 = jnp.concatenate(
        [jnp.where(lanes2 < FC_OUT_DIM, t2, 0.0),                   # feat 33
         jnp.where(lanes2 >= FC_OUT_DIM, t2, 0.0)],                 # spat 11
        axis=0).astype(bf16)                                        # (2N, 44)
    enc = dot(acat, stacked2) + b2_ref[...]                         # (N, 44) f32

    # ---- head: relu(encoder) -> proj1 -> relu -> proj2 (lane-padded) ----
    h = relu(dot(relu(enc).astype(bf16), wp1_ref[...]) + bp1_ref[...])   # (N,33)
    out_ref[...] = dot(h.astype(bf16), wp2_ref[...]) + bp2_ref[...]      # (N,128)


# ---------------------------------------------------------------------------
# Parameter fusion (block-diagonal / padded / bf16) done once in the wrapper
# ---------------------------------------------------------------------------
def _block_diag(a, b):
    z_tr = jnp.zeros((a.shape[0], b.shape[1]), a.dtype)
    z_bl = jnp.zeros((b.shape[0], a.shape[1]), a.dtype)
    return jnp.concatenate(
        [jnp.concatenate([a, z_tr], axis=1),
         jnp.concatenate([z_bl, b], axis=1)], axis=0)


def _fuse_params(p):
    bf16 = jnp.bfloat16
    w0 = _block_diag(p["w_fc"], p["w_cfc"]).astype(bf16)          # (159, 64)
    b0 = jnp.concatenate([p["b_fc"], p["b_cfc"]], axis=1)         # (1, 64) f32
    w1 = _block_diag(p["w_f1"], p["w_s1"]).astype(bf16)           # (64, 64)
    b1 = jnp.concatenate([p["b_f1"], p["b_s1"]], axis=1)          # (1, 64) f32
    w2 = _block_diag(p["w_f2"], p["w_s2"]).astype(bf16)           # (64, 44)
    b2 = jnp.concatenate([p["b_f2"], p["b_s2"]], axis=1)          # (1, 44) f32
    wp1 = p["w_p1"].astype(bf16)                                  # (44, 33)
    bp1 = p["b_p1"]                                               # (1, 33) f32
    wp2 = jnp.pad(p["w_p2"], ((0, 0), (0, OUT_PAD - OUT_DIM))).astype(bf16)
    bp2 = jnp.pad(p["b_p2"], ((0, 0), (0, OUT_PAD - OUT_DIM)))
    return w0, b0, w1, b1, w2, b2, wp1, bp1, wp2, bp2


# ---------------------------------------------------------------------------
# Wrapper: batched pallas_call over the graph dimension
# ---------------------------------------------------------------------------
@jax.jit
def snap_gnn_forward(feat, spat, a_feat, a_spat, params):
    B, N, _ = feat.shape
    bf16 = jnp.bfloat16

    x_in = jnp.concatenate([feat, spat], axis=-1).astype(bf16)       # (B, N, 159)
    a_cat = jnp.concatenate([a_feat, a_spat], axis=-1).astype(bf16)  # (B, N, 2N)
    w0, b0, w1, b1, w2, b2, wp1, bp1, wp2, bp2 = _fuse_params(params)

    def batched(shape):
        return pl.BlockSpec((None,) + shape, lambda b: (b,) + (0,) * len(shape))

    def shared(shape):
        return pl.BlockSpec(shape, lambda b: (0,) * len(shape))

    args = (x_in, a_cat, w0, b0, w1, b1, w2, b2, wp1, bp1, wp2, bp2)
    in_specs = [
        batched((N, CAT_IN_DIM)), batched((N, 2 * N)),
        shared(w0.shape), shared(b0.shape),
        shared(w1.shape), shared(b1.shape),
        shared(w2.shape), shared(b2.shape),
        shared(wp1.shape), shared(bp1.shape),
        shared(wp2.shape), shared(bp2.shape),
    ]

    flops_per_graph = 2 * N * (
        CAT_IN_DIM * CAT_H0_DIM        # fused first linear
        + CAT_H0_DIM * CAT_H1_DIM      # fused GCN1 inner matmul
        + (2 * N) * CAT_H1_DIM         # fused GCN1 propagation (2N contraction)
        + CAT_H1_DIM * CAT_ENC_DIM     # fused GCN2 inner matmul
        + (2 * N) * CAT_ENC_DIM        # fused GCN2 propagation
        + CAT_ENC_DIM * HID_OUT_DIM    # proj1
        + HID_OUT_DIM * OUT_PAD)       # proj2 (padded)
    bytes_accessed = int(sum(a.size * a.dtype.itemsize for a in args)
                         + B * N * OUT_PAD * 4)

    out = pl.pallas_call(
        snap_gnn_kernel,
        out_shape=jax.ShapeDtypeStruct((B, N, OUT_PAD), jnp.float32),
        grid_spec=pltpu.PrefetchScalarGridSpec(
            num_scalar_prefetch=0,
            grid=(B,),
            in_specs=in_specs,
            out_specs=batched((N, OUT_PAD)),
        ),
        compiler_params=pltpu.CompilerParams(
            dimension_semantics=("parallel",),   # shard graphs across TCs (v7x)
            vmem_limit_bytes=8 << 20,            # ample headroom, well below VMEM
        ),
        cost_estimate=pl.CostEstimate(
            flops=int(B * flops_per_graph),
            transcendentals=0,
            bytes_accessed=bytes_accessed),
    )(*args)
    return out[..., :OUT_DIM]


# ---------------------------------------------------------------------------
# Glue: GCN normalized dense adjacency (PyG gcn_norm with self loops)
# ---------------------------------------------------------------------------
# TODO(synk): edge_index scatter-add -> dense A_hat stays in plain JAX; there
# is no clean dense-Pallas equivalent of the sparse scatter at this size.
def gcn_norm_dense(edge_index, num_nodes):
    src, dst = edge_index[0], edge_index[1]
    a = jnp.zeros((num_nodes, num_nodes), jnp.float32)
    a = a.at[dst, src].add(1.0)                              # message j -> i
    a = a + jnp.eye(num_nodes, dtype=jnp.float32)            # self loops
    deg = a.sum(axis=1)
    dinv = jnp.where(deg > 0, 1.0 / jnp.sqrt(deg), 0.0)
    return dinv[:, None] * a * dinv[None, :]


# ---------------------------------------------------------------------------
# Deterministic parameter init (synthetic; shapes follow SNAP_GNN.__init__)
# ---------------------------------------------------------------------------
def init_params(key):
    def lin(key, fan_in, fan_out):
        kw, kb = jax.random.split(key)
        bound = 1.0 / jnp.sqrt(fan_in)
        w = jax.random.uniform(kw, (fan_in, fan_out), jnp.float32, -bound, bound)
        b = jax.random.uniform(kb, (1, fan_out), jnp.float32, -bound, bound)
        return w, b

    keys = jax.random.split(key, 8)
    p = {}
    p["w_fc"], p["b_fc"] = lin(keys[0], GNN_INPUT_DIM, FC_DIM)          # fc
    p["w_cfc"], p["b_cfc"] = lin(keys[1], CNN_INPUT_DIM, CNN_DIM)       # cnn_fc
    p["w_f1"], p["b_f1"] = lin(keys[2], FC_DIM, LATENT_DIM)             # feat_conv1
    p["w_f2"], p["b_f2"] = lin(keys[3], LATENT_DIM, FC_OUT_DIM)         # feat_conv2
    p["w_s1"], p["b_s1"] = lin(keys[4], CNN_DIM, CNN_LATENT_DIM)        # spat_conv1
    p["w_s2"], p["b_s2"] = lin(keys[5], CNN_LATENT_DIM, CNN_OUT_DIM)    # spat_conv2
    p["w_p1"], p["b_p1"] = lin(keys[6], FC_OUT_DIM + CNN_OUT_DIM, HID_OUT_DIM)
    p["w_p2"], p["b_p2"] = lin(keys[7], HID_OUT_DIM, OUT_DIM)           # proj2
    return p


# ---------------------------------------------------------------------------
# Pure-JAX reference (per graph, unfused; mirrors bf16 MXU-operand rounding)
# ---------------------------------------------------------------------------
def snap_gnn_reference(feat, spat, a_feat, a_spat, p):
    bf = lambda x: x.astype(jnp.bfloat16)
    dot = lambda a, b: jnp.dot(bf(a), bf(b), preferred_element_type=jnp.float32)
    relu = lambda x: jnp.maximum(x, 0.0)
    xf = relu(dot(feat, p["w_fc"]) + p["b_fc"])
    xf = relu(dot(a_feat, dot(xf, p["w_f1"])) + p["b_f1"])
    xf = dot(a_feat, dot(xf, p["w_f2"])) + p["b_f2"]
    xs = relu(dot(spat, p["w_cfc"]) + p["b_cfc"])
    xs = relu(dot(a_spat, dot(xs, p["w_s1"])) + p["b_s1"])
    xs = dot(a_spat, dot(xs, p["w_s2"])) + p["b_s2"]
    x = relu(jnp.concatenate([xf, xs], axis=1))
    h = relu(dot(x, p["w_p1"]) + p["b_p1"])
    return dot(h, p["w_p2"]) + p["b_p2"]


# ---------------------------------------------------------------------------
if __name__ == "__main__":
    key = jax.random.PRNGKey(0)
    k_feat, k_spat, k_ef, k_es, k_params = jax.random.split(key, 5)

    B = 4           # graphs in the batch (grid dimension)
    N = 64          # nodes per graph
    E = 256         # directed edges per graph

    feat = jax.random.normal(k_feat, (B, N, GNN_INPUT_DIM), jnp.float32)
    spat = jax.random.normal(k_spat, (B, N, CNN_INPUT_DIM), jnp.float32)
    feat_edges = jax.random.randint(k_ef, (B, 2, E), 0, N, jnp.int32)
    spat_edges = jax.random.randint(k_es, (B, 2, E), 0, N, jnp.int32)

    a_feat = jnp.stack([gcn_norm_dense(feat_edges[b], N) for b in range(B)])
    a_spat = jnp.stack([gcn_norm_dense(spat_edges[b], N) for b in range(B)])

    params = init_params(k_params)

    out = snap_gnn_forward(feat, spat, a_feat, a_spat, params)
    out = jax.block_until_ready(out)
    assert out.shape == (B, N, OUT_DIM)

    ref = jax.vmap(
        lambda f, s, af, asp: snap_gnn_reference(f, s, af, asp, params)
    )(feat, spat, a_feat, a_spat)

    max_err = float(jnp.max(jnp.abs(out - ref)))
    assert jnp.allclose(out, ref, atol=1e-2, rtol=1e-2), f"mismatch vs reference: {max_err}"

    print("KERNEL_OK")
</pallas_src>

<mosaic_0001>
module attributes {stable_mosaic.version = 11 : i64} {
  func.func @snap_gnn_kernel(%arg0: i32, %arg1: memref<1x64x159xbf16, #tpu.memory_space<vmem>>, %arg2: memref<1x64x128xbf16, #tpu.memory_space<vmem>>, %arg3: memref<159x64xbf16, #tpu.memory_space<vmem>>, %arg4: memref<1x64xf32, #tpu.memory_space<vmem>>, %arg5: memref<64x64xbf16, #tpu.memory_space<vmem>>, %arg6: memref<1x64xf32, #tpu.memory_space<vmem>>, %arg7: memref<64x44xbf16, #tpu.memory_space<vmem>>, %arg8: memref<1x44xf32, #tpu.memory_space<vmem>>, %arg9: memref<44x33xbf16, #tpu.memory_space<vmem>>, %arg10: memref<1x33xf32, #tpu.memory_space<vmem>>, %arg11: memref<33x128xbf16, #tpu.memory_space<vmem>>, %arg12: memref<1x128xf32, #tpu.memory_space<vmem>>, %arg13: memref<1x64x128xf32, #tpu.memory_space<vmem>>) attributes {dimension_semantics = [#tpu.dimension_semantics<parallel>], iteration_bounds = array<i64: 4>, scalar_prefetch = 0 : i64, scratch_operands = 0 : i64, tpu.core_type = #tpu.core_type<tc>, window_params = [{transform_indices = @transform_0, window_bounds = array<i64: 1, 64, 159>}, {transform_indices = @transform_1, window_bounds = array<i64: 1, 64, 128>}, {pipeline_mode = #tpu.pipeline_mode<synchronous>, transform_indices = @transform_2, window_bounds = array<i64: 159, 64>}, {pipeline_mode = #tpu.pipeline_mode<synchronous>, transform_indices = @transform_3, window_bounds = array<i64: 1, 64>}, {pipeline_mode = #tpu.pipeline_mode<synchronous>, transform_indices = @transform_4, window_bounds = array<i64: 64, 64>}, {pipeline_mode = #tpu.pipeline_mode<synchronous>, transform_indices = @transform_5, window_bounds = array<i64: 1, 64>}, {pipeline_mode = #tpu.pipeline_mode<synchronous>, transform_indices = @transform_6, window_bounds = array<i64: 64, 44>}, {pipeline_mode = #tpu.pipeline_mode<synchronous>, transform_indices = @transform_7, window_bounds = array<i64: 1, 44>}, {pipeline_mode = #tpu.pipeline_mode<synchronous>, transform_indices = @transform_8, window_bounds = array<i64: 44, 33>}, {pipeline_mode = #tpu.pipeline_mode<synchronous>, transform_indices = @transform_9, window_bounds = array<i64: 1, 33>}, {pipeline_mode = #tpu.pipeline_mode<synchronous>, transform_indices = @transform_10, window_bounds = array<i64: 33, 128>}, {pipeline_mode = #tpu.pipeline_mode<synchronous>, transform_indices = @transform_11, window_bounds = array<i64: 1, 128>}, {transform_indices = @transform_12, window_bounds = array<i64: 1, 64, 128>}]} {
    %c0 = arith.constant 0 : index
    %c0_0 = arith.constant 0 : index
    %c0_1 = arith.constant 0 : index
    %0 = vector.load %arg1[%c0, %c0_0, %c0_1] : memref<1x64x159xbf16, #tpu.memory_space<vmem>>, vector<1x64x159xbf16>
    %1 = vector.shape_cast %0 : vector<1x64x159xbf16> to vector<64x159xbf16>
    %c0_2 = arith.constant 0 : index
    %c0_3 = arith.constant 0 : index
    %c0_4 = arith.constant 0 : index
    %2 = vector.load %arg2[%c0_2, %c0_3, %c0_4] : memref<1x64x128xbf16, #tpu.memory_space<vmem>>, vector<1x64x128xbf16>
    %3 = vector.shape_cast %2 : vector<1x64x128xbf16> to vector<64x128xbf16>
    %c0_5 = arith.constant 0 : index
    %c0_6 = arith.constant 0 : index
    %4 = vector.load %arg3[%c0_5, %c0_6] : memref<159x64xbf16, #tpu.memory_space<vmem>>, vector<159x64xbf16>
    %cst = arith.constant dense<0.000000e+00> : vector<64x64xf32>
    %5 = tpu.matmul %1, %4, %cst {dimension_numbers = #tpu.dot_dimension_numbers<[1], [0], [0], [1], [0, 0, 1, 1], [], []>} : vector<64x159xbf16>, vector<159x64xbf16>, vector<64x64xf32> -> vector<64x64xf32>
    %c0_7 = arith.constant 0 : index
    %c0_8 = arith.constant 0 : index
    %6 = vector.load %arg4[%c0_7, %c0_8] : memref<1x64xf32, #tpu.memory_space<vmem>>, vector<1x64xf32>
    %7 = vector.broadcast %6 : vector<1x64xf32> to vector<64x64xf32>
    %8 = arith.addf %5, %7 : vector<64x64xf32>
    %cst_9 = arith.constant 0.000000e+00 : f32
    %9 = vector.broadcast %cst_9 : f32 to vector<64x64xf32>
    %10 = arith.maximumf %8, %9 : vector<64x64xf32>
    %11 = arith.truncf %10 : vector<64x64xf32> to vector<64x64xbf16>
    %c0_10 = arith.constant 0 : index
    %c0_11 = arith.constant 0 : index
    %12 = vector.load %arg5[%c0_10, %c0_11] : memref<64x64xbf16, #tpu.memory_space<vmem>>, vector<64x64xbf16>
    %cst_12 = arith.constant dense<0.000000e+00> : vector<64x64xf32>
    %13 = tpu.matmul %11, %12, %cst_12 {dimension_numbers = #tpu.dot_dimension_numbers<[1], [0], [0], [1], [0, 0, 1, 1], [], []>} : vector<64x64xbf16>, vector<64x64xbf16>, vector<64x64xf32> -> vector<64x64xf32>
    %14 = tpu.iota {dimensions = array<i32: 1>} : vector<64x64xi32>
    %c32_i32 = arith.constant 32 : i32
    %15 = vector.broadcast %c32_i32 : i32 to vector<64x64xi32>
    %16 = arith.cmpi slt, %14, %15 : vector<64x64xi32>
    %cst_13 = arith.constant 0.000000e+00 : f32
    %17 = vector.broadcast %cst_13 : f32 to vector<64x64xf32>
    %18 = arith.select %16, %13, %17 : vector<64x64xi1>, vector<64x64xf32>
    %c32_i32_14 = arith.constant 32 : i32
    %19 = vector.broadcast %c32_i32_14 : i32 to vector<64x64xi32>
    %20 = arith.cmpi sge, %14, %19 : vector<64x64xi32>
    %cst_15 = arith.constant 0.000000e+00 : f32
    %21 = vector.broadcast %cst_15 : f32 to vector<64x64xf32>
    %22 = arith.select %20, %13, %21 : vector<64x64xi1>, vector<64x64xf32>
    %23 = tpu.concatenate %18, %22 in 0 : vector<64x64xf32>, vector<64x64xf32> -> vector<128x64xf32>
    %24 = arith.truncf %23 : vector<128x64xf32> to vector<128x64xbf16>
    %cst_16 = arith.constant dense<0.000000e+00> : vector<64x64xf32>
    %25 = tpu.matmul %3, %24, %cst_16 {dimension_numbers = #tpu.dot_dimension_numbers<[1], [0], [0], [1], [0, 0, 1, 1], [], []>} : vector<64x128xbf16>, vector<128x64xbf16>, vector<64x64xf32> -> vector<64x64xf32>
    %c0_17 = arith.constant 0 : index
    %c0_18 = arith.constant 0 : index
    %26 = vector.load %arg6[%c0_17, %c0_18] : memref<1x64xf32, #tpu.memory_space<vmem>>, vector<1x64xf32>
    %27 = vector.broadcast %26 : vector<1x64xf32> to vector<64x64xf32>
    %28 = arith.addf %25, %27 : vector<64x64xf32>
    %cst_19 = arith.constant 0.000000e+00 : f32
    %29 = vector.broadcast %cst_19 : f32 to vector<64x64xf32>
    %30 = arith.maximumf %28, %29 : vector<64x64xf32>
    %31 = arith.truncf %30 : vector<64x64xf32> to vector<64x64xbf16>
    %c0_20 = arith.constant 0 : index
    %c0_21 = arith.constant 0 : index
    %32 = vector.load %arg7[%c0_20, %c0_21] : memref<64x44xbf16, #tpu.memory_space<vmem>>, vector<64x44xbf16>
    %cst_22 = arith.constant dense<0.000000e+00> : vector<64x44xf32>
    %33 = tpu.matmul %31, %32, %cst_22 {dimension_numbers = #tpu.dot_dimension_numbers<[1], [0], [0], [1], [0, 0, 1, 1], [], []>} : vector<64x64xbf16>, vector<64x44xbf16>, vector<64x44xf32> -> vector<64x44xf32>
    %34 = tpu.iota {dimensions = array<i32: 1>} : vector<64x44xi32>
    %c33_i32 = arith.constant 33 : i32
    %35 = vector.broadcast %c33_i32 : i32 to vector<64x44xi32>
    %36 = arith.cmpi slt, %34, %35 : vector<64x44xi32>
    %cst_23 = arith.constant 0.000000e+00 : f32
    %37 = vector.broadcast %cst_23 : f32 to vector<64x44xf32>
    %38 = arith.select %36, %33, %37 : vector<64x44xi1>, vector<64x44xf32>
    %c33_i32_24 = arith.constant 33 : i32
    %39 = vector.broadcast %c33_i32_24 : i32 to vector<64x44xi32>
    %40 = arith.cmpi sge, %34, %39 : vector<64x44xi32>
    %cst_25 = arith.constant 0.000000e+00 : f32
    %41 = vector.broadcast %cst_25 : f32 to vector<64x44xf32>
    %42 = arith.select %40, %33, %41 : vector<64x44xi1>, vector<64x44xf32>
    %43 = tpu.concatenate %38, %42 in 0 : vector<64x44xf32>, vector<64x44xf32> -> vector<128x44xf32>
    %44 = arith.truncf %43 : vector<128x44xf32> to vector<128x44xbf16>
    %cst_26 = arith.constant dense<0.000000e+00> : vector<64x44xf32>
    %45 = tpu.matmul %3, %44, %cst_26 {dimension_numbers = #tpu.dot_dimension_numbers<[1], [0], [0], [1], [0, 0, 1, 1], [], []>} : vector<64x128xbf16>, vector<128x44xbf16>, vector<64x44xf32> -> vector<64x44xf32>
    %c0_27 = arith.constant 0 : index
    %c0_28 = arith.constant 0 : index
    %46 = vector.load %arg8[%c0_27, %c0_28] : memref<1x44xf32, #tpu.memory_space<vmem>>, vector<1x44xf32>
    %47 = vector.broadcast %46 : vector<1x44xf32> to vector<64x44xf32>
    %48 = arith.addf %45, %47 : vector<64x44xf32>
    %cst_29 = arith.constant 0.000000e+00 : f32
    %49 = vector.broadcast %cst_29 : f32 to vector<64x44xf32>
    %50 = arith.maximumf %48, %49 : vector<64x44xf32>
    %51 = arith.truncf %50 : vector<64x44xf32> to vector<64x44xbf16>
    %c0_30 = arith.constant 0 : index
    %c0_31 = arith.constant 0 : index
    %52 = vector.load %arg9[%c0_30, %c0_31] : memref<44x33xbf16, #tpu.memory_space<vmem>>, vector<44x33xbf16>
    %cst_32 = arith.constant dense<0.000000e+00> : vector<64x33xf32>
    %53 = tpu.matmul %51, %52, %cst_32 {dimension_numbers = #tpu.dot_dimension_numbers<[1], [0], [0], [1], [0, 0, 1, 1], [], []>} : vector<64x44xbf16>, vector<44x33xbf16>, vector<64x33xf32> -> vector<64x33xf32>
    %c0_33 = arith.constant 0 : index
    %c0_34 = arith.constant 0 : index
    %54 = vector.load %arg10[%c0_33, %c0_34] : memref<1x33xf32, #tpu.memory_space<vmem>>, vector<1x33xf32>
    %55 = vector.broadcast %54 : vector<1x33xf32> to vector<64x33xf32>
    %56 = arith.addf %53, %55 : vector<64x33xf32>
    %cst_35 = arith.constant 0.000000e+00 : f32
    %57 = vector.broadcast %cst_35 : f32 to vector<64x33xf32>
    %58 = arith.maximumf %56, %57 : vector<64x33xf32>
    %59 = arith.truncf %58 : vector<64x33xf32> to vector<64x33xbf16>
    %c0_36 = arith.constant 0 : index
    %c0_37 = arith.constant 0 : index
    %60 = vector.load %arg11[%c0_36, %c0_37] : memref<33x128xbf16, #tpu.memory_space<vmem>>, vector<33x128xbf16>
    %cst_38 = arith.constant dense<0.000000e+00> : vector<64x128xf32>
    %61 = tpu.matmul %59, %60, %cst_38 {dimension_numbers = #tpu.dot_dimension_numbers<[1], [0], [0], [1], [0, 0, 1, 1], [], []>} : vector<64x33xbf16>, vector<33x128xbf16>, vector<64x128xf32> -> vector<64x128xf32>
    %c0_39 = arith.constant 0 : index
    %c0_40 = arith.constant 0 : index
    %62 = vector.load %arg12[%c0_39, %c0_40] : memref<1x128xf32, #tpu.memory_space<vmem>>, vector<1x128xf32>
    %63 = vector.broadcast %62 : vector<1x128xf32> to vector<64x128xf32>
    %64 = arith.addf %61, %63 : vector<64x128xf32>
    %c0_41 = arith.constant 0 : index
    %c0_42 = arith.constant 0 : index
    %c0_43 = arith.constant 0 : index
    %65 = vector.load %arg13[%c0_41, %c0_42, %c0_43] : memref<1x64x128xf32, #tpu.memory_space<vmem>>, vector<1x64x128xf32>
    %66 = vector.shape_cast %65 : vector<1x64x128xf32> to vector<64x128xf32>
    %67 = vector.shape_cast %64 : vector<64x128xf32> to vector<1x64x128xf32>
    tpu.vector_store %arg13[%c0_41, %c0_42, %c0_43], %67 {strides = array<i32>} : memref<1x64x128xf32, #tpu.memory_space<vmem>>, vector<1x64x128xf32>,
    return
  }
  func.func @transform_0(%arg0: i32) -> (i32, i32, i32) {
    %c0_i32 = arith.constant 0 : i32
    %c0_i32_0 = arith.constant 0 : i32
    %c0_i32_1 = arith.constant 0 : i32
    return %arg0, %c0_i32, %c0_i32_0 : i32, i32, i32
  }
  func.func @transform_1(%arg0: i32) -> (i32, i32, i32) {
    %c0_i32 = arith.constant 0 : i32
    %c0_i32_0 = arith.constant 0 : i32
    %c0_i32_1 = arith.constant 0 : i32
    return %arg0, %c0_i32, %c0_i32_0 : i32, i32, i32
  }
  func.func @transform_2(%arg0: i32) -> (i32, i32) {
    %c0_i32 = arith.constant 0 : i32
    %c0_i32_0 = arith.constant 0 : i32
    %c0_i32_1 = arith.constant 0 : i32
    return %c0_i32, %c0_i32_0 : i32, i32
  }
  func.func @transform_3(%arg0: i32) -> (i32, i32) {
    %c0_i32 = arith.constant 0 : i32
    %c0_i32_0 = arith.constant 0 : i32
    %c0_i32_1 = arith.constant 0 : i32
    return %c0_i32, %c0_i32_0 : i32, i32
  }
  func.func @transform_4(%arg0: i32) -> (i32, i32) {
    %c0_i32 = arith.constant 0 : i32
    %c0_i32_0 = arith.constant 0 : i32
    %c0_i32_1 = arith.constant 0 : i32
    return %c0_i32, %c0_i32_0 : i32, i32
  }
  func.func @transform_5(%arg0: i32) -> (i32, i32) {
    %c0_i32 = arith.constant 0 : i32
    %c0_i32_0 = arith.constant 0 : i32
    %c0_i32_1 = arith.constant 0 : i32
    return %c0_i32, %c0_i32_0 : i32, i32
  }
  func.func @transform_6(%arg0: i32) -> (i32, i32) {
    %c0_i32 = arith.constant 0 : i32
    %c0_i32_0 = arith.constant 0 : i32
    %c0_i32_1 = arith.constant 0 : i32
    return %c0_i32, %c0_i32_0 : i32, i32
  }
  func.func @transform_7(%arg0: i32) -> (i32, i32) {
    %c0_i32 = arith.constant 0 : i32
    %c0_i32_0 = arith.constant 0 : i32
    %c0_i32_1 = arith.constant 0 : i32
    return %c0_i32, %c0_i32_0 : i32, i32
  }
  func.func @transform_8(%arg0: i32) -> (i32, i32) {
    %c0_i32 = arith.constant 0 : i32
    %c0_i32_0 = arith.constant 0 : i32
    %c0_i32_1 = arith.constant 0 : i32
    return %c0_i32, %c0_i32_0 : i32, i32
  }
  func.func @transform_9(%arg0: i32) -> (i32, i32) {
    %c0_i32 = arith.constant 0 : i32
    %c0_i32_0 = arith.constant 0 : i32
    %c0_i32_1 = arith.constant 0 : i32
    return %c0_i32, %c0_i32_0 : i32, i32
  }
  func.func @transform_10(%arg0: i32) -> (i32, i32) {
    %c0_i32 = arith.constant 0 : i32
    %c0_i32_0 = arith.constant 0 : i32
    %c0_i32_1 = arith.constant 0 : i32
    return %c0_i32, %c0_i32_0 : i32, i32
  }
  func.func @transform_11(%arg0: i32) -> (i32, i32) {
    %c0_i32 = arith.constant 0 : i32
    %c0_i32_0 = arith.constant 0 : i32
    %c0_i32_1 = arith.constant 0 : i32
    return %c0_i32, %c0_i32_0 : i32, i32
  }
  func.func @transform_12(%arg0: i32) -> (i32, i32, i32) {
    %c0_i32 = arith.constant 0 : i32
    %c0_i32_0 = arith.constant 0 : i32
    %c0_i32_1 = arith.constant 0 : i32
    return %arg0, %c0_i32, %c0_i32_0 : i32, i32, i32
  }
}

</mosaic_0001>

<llo_original>
// kernel: snap_gnn_forward.1
$region0: #{snap_gnn_forward.1}
  #allocation0 [shape = 'u32[]', space=smem, size = 0x4, offset = 0x4, fixed_abs, tag = 'smem constant byte address 0x4 - core index']
  #allocation1 [shape = 'u32[144,128]{1,0:T(1,128)}', space=vmem, size = 0x12000, scoped, tag = 'internal scratch']
  %s0 = inlined_call_operand.vmem [shape: bf16[4,64,159], index: 0, kind: input, shape index: {}]
  %s1 = inlined_call_operand.vmem [shape: bf16[4,64,128], index: 1, kind: input, shape index: {}]
  %s2 = inlined_call_operand.vmem [shape: bf16[159,64], index: 2, kind: input, shape index: {}]
  %s3 = inlined_call_operand.vmem [shape: f32[1,64], index: 3, kind: input, shape index: {}]
  %s4 = inlined_call_operand.vmem [shape: bf16[64,64], index: 4, kind: input, shape index: {}]
  %s5 = inlined_call_operand.vmem [shape: f32[1,64], index: 5, kind: input, shape index: {}]
  %s6 = inlined_call_operand.vmem [shape: bf16[64,44], index: 6, kind: input, shape index: {}]
  %s7 = inlined_call_operand.vmem [shape: f32[1,44], index: 7, kind: input, shape index: {}]
  %s8 = inlined_call_operand.vmem [shape: bf16[44,33], index: 8, kind: input, shape index: {}]
  %s9 = inlined_call_operand.vmem [shape: f32[1,33], index: 9, kind: input, shape index: {}]
  %s10 = inlined_call_operand.vmem [shape: bf16[33,128], index: 10, kind: input, shape index: {}]
  %s11 = inlined_call_operand.vmem [shape: f32[1,128], index: 11, kind: input, shape index: {}]
  %s12 = inlined_call_operand.vmem [shape: f32[4,64,128], index: 12, kind: output, shape index: {}]
  %s13 = sld [smem:[#allocation0]]
  $region81: #{snap_gnn_forward.1} parent=0
    _
  %s15 = ssub.s32 1, %s13
  %s16 = scalar_select 0, %s15, %s13
  loop: start=0, step=1, limit=6
  $region2: #{snap_gnn_forward.1} parent=0 // loop_pre_header
    _
  $region3: #{snap_gnn_forward.1} parent=0 // loop_header
    %s18 = sphi 0, %s22
    %p19 = scmp.ge.s32.totalorder %s18, 6
    %s28 = sphi 0, %s30
    %s31 = sphi 0, %s28
    %s32 = sphi 0, %s31
    %s48 = sphi 0, %s32
    %s54 = sphi 0, %s56
    %s57 = sphi 0, %s54
    %s58 = sphi 0, %s57
    %s74 = sphi 0, %s58
    %s78 = sphi 0, %s78
    %s80 = sphi 0, %s78
    %s81 = sphi 0, %s80
    %s95 = sphi 0, %s81
    %s99 = sphi 0, %s99
    %s101 = sphi 0, %s99
    %s102 = sphi 0, %s101
    %s116 = sphi 0, %s102
    %s120 = sphi 0, %s120
    %s122 = sphi 0, %s120
    %s123 = sphi 0, %s122
    %s137 = sphi 0, %s123
    %s141 = sphi 0, %s141
    %s143 = sphi 0, %s141
    %s144 = sphi 0, %s143
    %s158 = sphi 0, %s144
    %s162 = sphi 0, %s162
    %s164 = sphi 0, %s162
    %s165 = sphi 0, %s164
    %s179 = sphi 0, %s165
    %s183 = sphi 0, %s183
    %s185 = sphi 0, %s183
    %s186 = sphi 0, %s185
    %s200 = sphi 0, %s186
    %s204 = sphi 0, %s204
    %s206 = sphi 0, %s204
    %s207 = sphi 0, %s206
    %s221 = sphi 0, %s207
    %s225 = sphi 0, %s225
    %s227 = sphi 0, %s225
    %s228 = sphi 0, %s227
    %s242 = sphi 0, %s228
    %s246 = sphi 0, %s246
    %s248 = sphi 0, %s246
    %s249 = sphi 0, %s248
    %s263 = sphi 0, %s249
    %s267 = sphi 0, %s267
    %s269 = sphi 0, %s267
    %s270 = sphi 0, %s269
    %s284 = sphi 0, %s270
    %s290 = sphi 0, %s292
    %s293 = sphi 0, %s290
    %s294 = sphi 0, %s293
    %s310 = sphi 0, %s294
  $region4: #{snap_gnn_forward.1} parent=0 // loop_header_branch
    %21 = sbr.rel (%p19) target = $region8
  $region5: #{snap_gnn_forward.1} parent=0 // loop_body
    %s23 = ssub.s32 %s18, 1
    %s24 = ssub.s32 %s18, 2
    %s25 = sadd.s32 %s18, 1
    %s26 = ssub.s32 %s18, %s25
    %p27 = scmp.eq.s32.totalorder %s26, 0
    %s29 = sadd.s32 %s28, 1
    %s30 = scalar_select %p27, %s28, %s29
    %p33 = pneg %p27
    %p34 = scmp.eq.s32.totalorder %s18, 3
    %p35 = por %p33, %p34
    %p36 = scmp.ne.s32.totalorder %s28, %s31
    %p37 = scmp.eq.s32.totalorder %s18, 0
    %p38 = por %p36, %p37
    %p39 = scmp.ne.s32.totalorder %s28, %s31
    %p40 = scmp.eq.s32.totalorder %s23, 3
    %p41 = por %p39, %p40
    %p42 = scmp.ne.s32.totalorder %s31, %s32
    %p43 = scmp.eq.s32.totalorder %s23, 0
    %p44 = por %p42, %p43
    %p45 = scmp.ne.s32.totalorder %s31, %s32
    %p46 = scmp.eq.s32.totalorder %s24, 3
    %p47 = por %p45, %p46
    %p49 = scmp.ne.s32.totalorder %s32, %s48
    %p50 = scmp.eq.s32.totalorder %s24, 0
    %p51 = por %p49, %p50
    %s52 = ssub.s32 %s18, %s25
    %p53 = scmp.eq.s32.totalorder %s52, 0
    %s55 = sadd.s32 %s54, 1
    %s56 = scalar_select %p53, %s54, %s55
    %p59 = pneg %p53
    %p60 = scmp.eq.s32.totalorder %s18, 3
    %p61 = por %p59, %p60
    %p62 = scmp.ne.s32.totalorder %s54, %s57
    %p63 = scmp.eq.s32.totalorder %s18, 0
    %p64 = por %p62, %p63
    %p65 = scmp.ne.s32.totalorder %s54, %s57
    %p66 = scmp.eq.s32.totalorder %s23, 3
    %p67 = por %p65, %p66
    %p68 = scmp.ne.s32.totalorder %s57, %s58
    %p69 = scmp.eq.s32.totalorder %s23, 0
    %p70 = por %p68, %p69
    %p71 = scmp.ne.s32.totalorder %s57, %s58
    %p72 = scmp.eq.s32.totalorder %s24, 3
    %p73 = por %p71, %p72
    %p75 = scmp.ne.s32.totalorder %s58, %s74
    %p76 = scmp.eq.s32.totalorder %s24, 0
    %p77 = por %p75, %p76
    %s79 = sadd.s32 %s78, 1
    %p82 = scmp.eq.s32.totalorder %s18, 3
    %p83 = scmp.ne.s32.totalorder %s78, %s80
    %p84 = scmp.eq.s32.totalorder %s18, 0
    %p85 = por %p83, %p84
    %p86 = scmp.ne.s32.totalorder %s78, %s80
    %p87 = scmp.eq.s32.totalorder %s23, 3
    %p88 = por %p86, %p87
    %p89 = scmp.ne.s32.totalorder %s80, %s81
    %p90 = scmp.eq.s32.totalorder %s23, 0
    %p91 = por %p89, %p90
    %p92 = scmp.ne.s32.totalorder %s80, %s81
    %p93 = scmp.eq.s32.totalorder %s24, 3
    %p94 = por %p92, %p93
    %p96 = scmp.ne.s32.totalorder %s81, %s95
    %p97 = scmp.eq.s32.totalorder %s24, 0
    %p98 = por %p96, %p97
    %s100 = sadd.s32 %s99, 1
    %p103 = scmp.eq.s32.totalorder %s18, 3
    %p104 = scmp.ne.s32.totalorder %s99, %s101
    %p105 = scmp.eq.s32.totalorder %s18, 0
    %p106 = por %p104, %p105
    %p107 = scmp.ne.s32.totalorder %s99, %s101
    %p108 = scmp.eq.s32.totalorder %s23, 3
    %p109 = por %p107, %p108
    %p110 = scmp.ne.s32.totalorder %s101, %s102
    %p111 = scmp.eq.s32.totalorder %s23, 0
    %p112 = por %p110, %p111
    %p113 = scmp.ne.s32.totalorder %s101, %s102
    %p114 = scmp.eq.s32.totalorder %s24, 3
    %p115 = por %p113, %p114
    %p117 = scmp.ne.s32.totalorder %s102, %s116
    %p118 = scmp.eq.s32.totalorder %s24, 0
    %p119 = por %p117, %p118
    %s121 = sadd.s32 %s120, 1
    %p124 = scmp.eq.s32.totalorder %s18, 3
    %p125 = scmp.ne.s32.totalorder %s120, %s122
    %p126 = scmp.eq.s32.totalorder %s18, 0
    %p127 = por %p125, %p126
    %p128 = scmp.ne.s32.totalorder %s120, %s122
    %p129 = scmp.eq.s32.totalorder %s23, 3
    %p130 = por %p128, %p129
    %p131 = scmp.ne.s32.totalorder %s122, %s123
    %p132 = scmp.eq.s32.totalorder %s23, 0
    %p133 = por %p131, %p132
    %p134 = scmp.ne.s32.totalorder %s122, %s123
    %p135 = scmp.eq.s32.totalorder %s24, 3
    %p136 = por %p134, %p135
    %p138 = scmp.ne.s32.totalorder %s123, %s137
    %p139 = scmp.eq.s32.totalorder %s24, 0
    %p140 = por %p138, %p139
    %s142 = sadd.s32 %s141, 1
    %p145 = scmp.eq.s32.totalorder %s18, 3
    %p146 = scmp.ne.s32.totalorder %s141, %s143
    %p147 = scmp.eq.s32.totalorder %s18, 0
    %p148 = por %p146, %p147
    %p149 = scmp.ne.s32.totalorder %s141, %s143
    %p150 = scmp.eq.s32.totalorder %s23, 3
    %p151 = por %p149, %p150
    %p152 = scmp.ne.s32.totalorder %s143, %s144
    %p153 = scmp.eq.s32.totalorder %s23, 0
    %p154 = por %p152, %p153
    %p155 = scmp.ne.s32.totalorder %s143, %s144
    %p156 = scmp.eq.s32.totalorder %s24, 3
    %p157 = por %p155, %p156
    %p159 = scmp.ne.s32.totalorder %s144, %s158
    %p160 = scmp.eq.s32.totalorder %s24, 0
    %p161 = por %p159, %p160
    %s163 = sadd.s32 %s162, 1
    %p166 = scmp.eq.s32.totalorder %s18, 3
    %p167 = scmp.ne.s32.totalorder %s162, %s164
    %p168 = scmp.eq.s32.totalorder %s18, 0
    %p169 = por %p167, %p168
    %p170 = scmp.ne.s32.totalorder %s162, %s164
    %p171 = scmp.eq.s32.totalorder %s23, 3
    %p172 = por %p170, %p171
    %p173 = scmp.ne.s32.totalorder %s164, %s165
    %p174 = scmp.eq.s32.totalorder %s23, 0
    %p175 = por %p173, %p174
    %p176 = scmp.ne.s32.totalorder %s164, %s165
    %p177 = scmp.eq.s32.totalorder %s24, 3
    %p178 = por %p176, %p177
    %p180 = scmp.ne.s32.totalorder %s165, %s179
    %p181 = scmp.eq.s32.totalorder %s24, 0
    %p182 = por %p180, %p181
    %s184 = sadd.s32 %s183, 1
    %p187 = scmp.eq.s32.totalorder %s18, 3
    %p188 = scmp.ne.s32.totalorder %s183, %s185
    %p189 = scmp.eq.s32.totalorder %s18, 0
    %p190 = por %p188, %p189
    %p191 = scmp.ne.s32.totalorder %s183, %s185
    %p192 = scmp.eq.s32.totalorder %s23, 3
    %p193 = por %p191, %p192
    %p194 = scmp.ne.s32.totalorder %s185, %s186
    %p195 = scmp.eq.s32.totalorder %s23, 0
    %p196 = por %p194, %p195
    %p197 = scmp.ne.s32.totalorder %s185, %s186
    %p198 = scmp.eq.s32.totalorder %s24, 3
    %p199 = por %p197, %p198
    %p201 = scmp.ne.s32.totalorder %s186, %s200
    %p202 = scmp.eq.s32.totalorder %s24, 0
    %p203 = por %p201, %p202
    %s205 = sadd.s32 %s204, 1
    %p208 = scmp.eq.s32.totalorder %s18, 3
    %p209 = scmp.ne.s32.totalorder %s204, %s206
    %p210 = scmp.eq.s32.totalorder %s18, 0
    %p211 = por %p209, %p210
    %p212 = scmp.ne.s32.totalorder %s204, %s206
    %p213 = scmp.eq.s32.totalorder %s23, 3
    %p214 = por %p212, %p213
    %p215 = scmp.ne.s32.totalorder %s206, %s207
    %p216 = scmp.eq.s32.totalorder %s23, 0
    %p217 = por %p215, %p216
    %p218 = scmp.ne.s32.totalorder %s206, %s207
    %p219 = scmp.eq.s32.totalorder %s24, 3
    %p220 = por %p218, %p219
    %p222 = scmp.ne.s32.totalorder %s207, %s221
    %p223 = scmp.eq.s32.totalorder %s24, 0
    %p224 = por %p222, %p223
    %s226 = sadd.s32 %s225, 1
    %p229 = scmp.eq.s32.totalorder %s18, 3
    %p230 = scmp.ne.s32.totalorder %s225, %s227
    %p231 = scmp.eq.s32.totalorder %s18, 0
    %p232 = por %p230, %p231
    %p233 = scmp.ne.s32.totalorder %s225, %s227
    %p234 = scmp.eq.s32.totalorder %s23, 3
    %p235 = por %p233, %p234
    %p236 = scmp.ne.s32.totalorder %s227, %s228
    %p237 = scmp.eq.s32.totalorder %s23, 0
    %p238 = por %p236, %p237
    %p239 = scmp.ne.s32.totalorder %s227, %s228
    %p240 = scmp.eq.s32.totalorder %s24, 3
    %p241 = por %p239, %p240
    %p243 = scmp.ne.s32.totalorder %s228, %s242
    %p244 = scmp.eq.s32.totalorder %s24, 0
    %p245 = por %p243, %p244
    %s247 = sadd.s32 %s246, 1
    %p250 = scmp.eq.s32.totalorder %s18, 3
    %p251 = scmp.ne.s32.totalorder %s246, %s248
    %p252 = scmp.eq.s32.totalorder %s18, 0
    %p253 = por %p251, %p252
    %p254 = scmp.ne.s32.totalorder %s246, %s248
    %p255 = scmp.eq.s32.totalorder %s23, 3
    %p256 = por %p254, %p255
    %p257 = scmp.ne.s32.totalorder %s248, %s249
    %p258 = scmp.eq.s32.totalorder %s23, 0
    %p259 = por %p257, %p258
    %p260 = scmp.ne.s32.totalorder %s248, %s249
    %p261 = scmp.eq.s32.totalorder %s24, 3
    %p262 = por %p260, %p261
    %p264 = scmp.ne.s32.totalorder %s249, %s263
    %p265 = scmp.eq.s32.totalorder %s24, 0
    %p266 = por %p264, %p265
    %s268 = sadd.s32 %s267, 1
    %p271 = scmp.eq.s32.totalorder %s18, 3
    %p272 = scmp.ne.s32.totalorder %s267, %s269
    %p273 = scmp.eq.s32.totalorder %s18, 0
    %p274 = por %p272, %p273
    %p275 = scmp.ne.s32.totalorder %s267, %s269
    %p276 = scmp.eq.s32.totalorder %s23, 3
    %p277 = por %p275, %p276
    %p278 = scmp.ne.s32.totalorder %s269, %s270
    %p279 = scmp.eq.s32.totalorder %s23, 0
    %p280 = por %p278, %p279
    %p281 = scmp.ne.s32.totalorder %s269, %s270
    %p282 = scmp.eq.s32.totalorder %s24, 3
    %p283 = por %p281, %p282
    %p285 = scmp.ne.s32.totalorder %s270, %s284
    %p286 = scmp.eq.s32.totalorder %s24, 0
    %p287 = por %p285, %p286
    %s288 = ssub.s32 %s18, %s25
    %p289 = scmp.eq.s32.totalorder %s288, 0
    %s291 = sadd.s32 %s290, 1
    %s292 = scalar_select %p289, %s290, %s291
    %p295 = pneg %p289
    %p296 = scmp.eq.s32.totalorder %s18, 3
    %p297 = por %p295, %p296
    %p298 = scmp.ne.s32.totalorder %s290, %s293
    %p299 = scmp.eq.s32.totalorder %s18, 0
    %p300 = por %p298, %p299
    %p301 = scmp.ne.s32.totalorder %s290, %s293
    %p302 = scmp.eq.s32.totalorder %s23, 3
    %p303 = por %p301, %p302
    %p304 = scmp.ne.s32.totalorder %s293, %s294
    %p305 = scmp.eq.s32.totalorder %s23, 0
    %p306 = por %p304, %p305
    %p307 = scmp.ne.s32.totalorder %s293, %s294
    %p308 = scmp.eq.s32.totalorder %s24, 3
    %p309 = por %p307, %p308
    %p311 = scmp.ne.s32.totalorder %s294, %s310
    %p312 = scmp.eq.s32.totalorder %s24, 0
    %p313 = por %p311, %p312
    %p314 = scmp.le.s32.totalorder 1, %s18
    %p315 = scmp.lt.s32.totalorder %s18, 5
    %p316 = pnand %p314, %p315
    %p317 = pneg %p316
    // Predicated region
    $region9: #{snap_gnn_forward.1} parent=5 // pred_check
      _
    $region10: #{snap_gnn_forward.1} parent=5 // pred_check_branch
      %319 = sbr.rel (%p316) target = $region12
    $region11: #{snap_gnn_forward.1} parent=5 // pred_region
      %s320 = ssub.s32 %s18, 1
      // Predicated region
      $region13: #{snap_gnn_forward.1} parent=11 // pred_check
        %p321 = pneg %p91
      $region14: #{snap_gnn_forward.1} parent=11 // pred_check_branch
        %323 = sbr.rel (%p321) target = $region16
      $region15: #{snap_gnn_forward.1} parent=11 // pred_region
        _
      $region16: #{snap_gnn_forward.1} parent=11 // pred_fallthru
        _
      // Predicated region
      $region17: #{snap_gnn_forward.1} parent=11 // pred_check
        %p324 = pneg %p112
      $region18: #{snap_gnn_forward.1} parent=11 // pred_check_branch
        %326 = sbr.rel (%p324) target = $region20
      $region19: #{snap_gnn_forward.1} parent=11 // pred_region
        _
      $region20: #{snap_gnn_forward.1} parent=11 // pred_fallthru
        _
      // Predicated region
      $region21: #{snap_gnn_forward.1} parent=11 // pred_check
        %p327 = pneg %p133
      $region22: #{snap_gnn_forward.1} parent=11 // pred_check_branch
        %329 = sbr.rel (%p327) target = $region24
      $region23: #{snap_gnn_forward.1} parent=11 // pred_region
        _
      $region24: #{snap_gnn_forward.1} parent=11 // pred_fallthru
        _
      // Predicated region
      $region25: #{snap_gnn_forward.1} parent=11 // pred_check
        %p330 = pneg %p154
      $region26: #{snap_gnn_forward.1} parent=11 // pred_check_branch
        %332 = sbr.rel (%p330) target = $region28
      $region27: #{snap_gnn_forward.1} parent=11 // pred_region
        _
      $region28: #{snap_gnn_forward.1} parent=11 // pred_fallthru
        _
      // Predicated region
      $region29: #{snap_gnn_forward.1} parent=11 // pred_check
        %p333 = pneg %p175
      $region30: #{snap_gnn_forward.1} parent=11 // pred_check_branch
        %335 = sbr.rel (%p333) target = $region32
      $region31: #{snap_gnn_forward.1} parent=11 // pred_region
        _
      $region32: #{snap_gnn_forward.1} parent=11 // pred_fallthru
        _
      // Predicated region
      $region33: #{snap_gnn_forward.1} parent=11 // pred_check
        %p336 = pneg %p196
      $region34: #{snap_gnn_forward.1} parent=11 // pred_check_branch
        %338 = sbr.rel (%p336) target = $region36
      $region35: #{snap_gnn_forward.1} parent=11 // pred_region
        _
      $region36: #{snap_gnn_forward.1} parent=11 // pred_fallthru
        _
      // Predicated region
      $region37: #{snap_gnn_forward.1} parent=11 // pred_check
        %p339 = pneg %p217
      $region38: #{snap_gnn_forward.1} parent=11 // pred_check_branch
        %341 = sbr.rel (%p339) target = $region40
      $region39: #{snap_gnn_forward.1} parent=11 // pred_region
        _
      $region40: #{snap_gnn_forward.1} parent=11 // pred_fallthru
        _
      // Predicated region
      $region41: #{snap_gnn_forward.1} parent=11 // pred_check
        %p342 = pneg %p238
      $region42: #{snap_gnn_forward.1} parent=11 // pred_check_branch
        %344 = sbr.rel (%p342) target = $region44
      $region43: #{snap_gnn_forward.1} parent=11 // pred_region
        _
      $region44: #{snap_gnn_forward.1} parent=11 // pred_fallthru
        _
      // Predicated region
      $region45: #{snap_gnn_forward.1} parent=11 // pred_check
        %p345 = pneg %p259
      $region46: #{snap_gnn_forward.1} parent=11 // pred_check_branch
        %347 = sbr.rel (%p345) target = $region48
      $region47: #{snap_gnn_forward.1} parent=11 // pred_region
        _
      $region48: #{snap_gnn_forward.1} parent=11 // pred_fallthru
        _
      // Predicated region
      $region49: #{snap_gnn_forward.1} parent=11 // pred_check
        %p348 = pneg %p280
      $region50: #{snap_gnn_forward.1} parent=11 // pred_check_branch
        %350 = sbr.rel (%p348) target = $region52
      $region51: #{snap_gnn_forward.1} parent=11 // pred_region
        _
      $region52: #{snap_gnn_forward.1} parent=11 // pred_fallthru
        _
    $region12: #{snap_gnn_forward.1} parent=5 // pred_fallthru
      _
    %p351 = scmp.lt.s32.totalorder %s18, 4
    // Predicated region
    $region53: #{snap_gnn_forward.1} parent=5 // pred_check
      %p352 = pneg %p351
    $region54: #{snap_gnn_forward.1} parent=5 // pred_check_branch
      %354 = sbr.rel (%p352) target = $region56
    $region55: #{snap_gnn_forward.1} parent=5 // pred_region
      // Predicated region
      $region57: #{snap_gnn_forward.1} parent=55 // pred_check
        %p355 = pneg %p38
      $region58: #{snap_gnn_forward.1} parent=55 // pred_check_branch
        %357 = sbr.rel (%p355) target = $region60
      $region59: #{snap_gnn_forward.1} parent=55 // pred_region
        %p358 = scmp.lt.s32.totalorder %s18, 3
        %s359 = scalar_select %p358, %s18, 3
        %s360 = smul.addr %s359, 16
        %s361 = smul.addr %s360, 4
        %s362 = scalar_lea.vmem %s0, %s361
      $region60: #{snap_gnn_forward.1} parent=55 // pred_fallthru
        _
      // Predicated region
      $region61: #{snap_gnn_forward.1} parent=55 // pred_check
        %p363 = pneg %p64
      $region62: #{snap_gnn_forward.1} parent=55 // pred_check_branch
        %365 = sbr.rel (%p363) target = $region64
      $region63: #{snap_gnn_forward.1} parent=55 // pred_region
        %p366 = scmp.lt.s32.totalorder %s18, 3
        %s367 = scalar_select %p366, %s18, 3
        %s368 = smul.addr %s367, 8
        %s369 = smul.addr %s368, 4
        %s370 = scalar_lea.vmem %s1, %s369
      $region64: #{snap_gnn_forward.1} parent=55 // pred_fallthru
        _
    $region56: #{snap_gnn_forward.1} parent=5 // pred_fallthru
      _
    %p371 = scmp.le.s32.totalorder 1, %s18
    %p372 = scmp.lt.s32.totalorder %s18, 5
    %p373 = pnand %p371, %p372
    %p374 = pneg %p373
    // Predicated region
    $region65: #{snap_gnn_forward.1} parent=5 // pred_check
      _
    $region66: #{snap_gnn_forward.1} parent=5 // pred_check_branch
      %376 = sbr.rel (%p373) target = $region68
    $region67: #{snap_gnn_forward.1} parent=5 // pred_region
      %s377 = ssub.s32 %s18, 1
      %p378 = scmp.lt.s32.totalorder %s23, 3
      %s379 = scalar_select %p378, %s23, 3
      %s380 = smul.addr %s379, 16
      %s381 = smul.addr %s380, 4
      %s382 = scalar_lea.vmem %s0, %s381
      %p383 = pneg %p44
      %p384 = pneg %p41
      %p385 = scmp.lt.s32.totalorder %s23, 3
      %s386 = scalar_select %p385, %s23, 3
      %s387 = smul.addr %s386, 8
      %s388 = smul.addr %s387, 4
      %s389 = scalar_lea.vmem %s1, %s388
      %p390 = pneg %p70
      %p391 = pneg %p67
      %p392 = pneg %p91
      %p393 = pneg %p88
      %p394 = pneg %p112
      %p395 = pneg %p109
      %p396 = pneg %p133
      %p397 = pneg %p130
      %p398 = pneg %p154
      %p399 = pneg %p151
      %p400 = pneg %p175
      %p401 = pneg %p172
      %p402 = pneg %p196
      %p403 = pneg %p193
      %p404 = pneg %p217
      %p405 = pneg %p214
      %p406 = pneg %p238
      %p407 = pneg %p235
      %p408 = pneg %p259
      %p409 = pneg %p256
      %p410 = pneg %p280
      %p411 = pneg %p277
      %p412 = pneg %p306
      %p413 = pneg %p303
      %p414 = scmp.lt.s32.totalorder %s23, 3
      %s415 = scalar_select %p414, %s23, 3
      %s416 = smul.addr %s415, 8
      %s417 = smul.addr %s416, 8
      %s418 = scalar_lea.vmem %s12, %s417
      %p419 = scmp.lt.s32.totalorder %s23, 3
      %s420 = scalar_select %p419, %s23, 3
      %s421 = smul.addr %s420, 16
      %s422 = smul.addr %s421, 4
      %s423 = scalar_lea.vmem %s0, %s422
      %p424 = scmp.lt.s32.totalorder %s23, 3
      %s425 = scalar_select %p424, %s23, 3
      %s426 = smul.addr %s425, 8
      %s427 = smul.addr %s426, 4
      %s428 = scalar_lea.vmem %s1, %s427
      %p429 = scmp.lt.s32.totalorder %s23, 3
      %s430 = scalar_select %p429, %s23, 3
      %s431 = smul.addr %s430, 8
      %s432 = smul.addr %s431, 8
      %s433 = scalar_lea.vmem %s12, %s432
      %v435 = vld [vmem:[%s423] sm:$0xff]
      %v436 = vld [vmem:[%s423 + $0x8] sm:$0xff]
      %v437 = vld [vmem:[%s423 + $0x10] sm:$0xff]
      %v438 = vld [vmem:[%s423 + $0x18] sm:$0xff]
      %v439 = vld [vmem:[%s423 + $0x20] sm:$0xff]
      %v440 = vld [vmem:[%s423 + $0x28] sm:$0xff]
      %v441 = vld [vmem:[%s423 + $0x30] sm:$0xff]
      %v442 = vld [vmem:[%s423 + $0x38] sm:$0xff]
      %v443 = vld [vmem:[%s428] sm:$0xf]
      %v444 = vld [vmem:[%s428 + $0x4] sm:$0xf]
      %v445 = vld [vmem:[%s428 + $0x8] sm:$0xf]
      %v446 = vld [vmem:[%s428 + $0xc] sm:$0xf]
      %v447 = vld [vmem:[%s428 + $0x10] sm:$0xf]
      %v448 = vld [vmem:[%s428 + $0x14] sm:$0xf]
      %v449 = vld [vmem:[%s428 + $0x18] sm:$0xf]
      %v450 = vld [vmem:[%s428 + $0x1c] sm:$0xf]
      %v451 = vld [vmem:[%s2] sm:$0xf]
      %v452 = vld [vmem:[%s2 + $0x4] sm:$0xf]
      %v453 = vld [vmem:[%s2 + $0x8] sm:$0xf]
      %v454 = vld [vmem:[%s2 + $0xc] sm:$0xf]
      %v455 = vld [vmem:[%s2 + $0x10] sm:$0xf]
      %v456 = vld [vmem:[%s2 + $0x14] sm:$0xf]
      %v457 = vld [vmem:[%s2 + $0x18] sm:$0xf]
      %v458 = vld [vmem:[%s2 + $0x1c] sm:$0xf]
      %v459 = vld [vmem:[%s2 + $0x20] sm:$0xf]
      %v460 = vld [vmem:[%s2 + $0x24] sm:$0xf]
      %v461 = vld [vmem:[%s2 + $0x28] sm:$0xf]
      %v462 = vld [vmem:[%s2 + $0x2c] sm:$0xf]
      %v463 = vld [vmem:[%s2 + $0x30] sm:$0xf]
      %v464 = vld [vmem:[%s2 + $0x34] sm:$0xf]
      %v465 = vld [vmem:[%s2 + $0x38] sm:$0xf]
      %v466 = vld [vmem:[%s2 + $0x3c] sm:$0xf]
      %v467 = vld [vmem:[%s2 + $0x40] sm:$0xf]
      %v468 = vld [vmem:[%s2 + $0x44] sm:$0xf]
      %v469 = vld [vmem:[%s2 + $0x48] sm:$0xf]
      %v470 = vld [vmem:[%s2 + $0x4c] sm:$0xf]
      %v471 = vld [vmem:[%s3] sm:$0x1]
      %v473 = vlaneseq
      %v474 = vshrl.u32 %v473, 7
      %v475 = vsub.s32 0, %v474
      %v476 = vrot.slane %v471, %v475
      %v486 = vunpack.c.l.b16 %v435
      %v487 = vunpack.c.h.b16 %v435
      %v488 = vunpack.c.l.b16 %v436
      %v489 = vunpack.c.h.b16 %v436
      %v490 = vunpack.c.l.b16 %v437
      %v491 = vunpack.c.h.b16 %v437
      %v492 = vunpack.c.l.b16 %v438
      %v493 = vunpack.c.h.b16 %v438
      %v494 = vunpack.c.l.b16 %v439
      %v495 = vunpack.c.h.b16 %v439
      %v496 = vunpack.c.l.b16 %v440
      %v497 = vunpack.c.h.b16 %v440
      %v498 = vunpack.c.l.b16 %v441
      %v499 = vunpack.c.h.b16 %v441
      %v500 = vunpack.c.l.b16 %v442
      %v501 = vunpack.c.h.b16 %v442
      %v502 = vpack.c.b16 %v488, %v486
      %v503 = vpack.c.b16 %v489, %v487
      %v504 = vpack.c.b16 %v492, %v490
      %v505 = vpack.c.b16 %v493, %v491
      %v506 = vpack.c.b16 %v496, %v494
      %v507 = vpack.c.b16 %v497, %v495
      %v508 = vpack.c.b16 %v500, %v498
      %v509 = vpack.c.b16 %v501, %v499
      %v534 = vunpack.c.l.b16 %v451
      %v535 = vunpack.c.l.b16 %v452
      %v536 = vunpack.c.l.b16 %v453
      %v537 = vunpack.c.l.b16 %v454
      %v538 = vunpack.c.l.b16 %v455
      %v539 = vunpack.c.l.b16 %v456
      %v540 = vunpack.c.l.b16 %v457
      %v541 = vunpack.c.l.b16 %v458
      %v542 = vunpack.c.l.b16 %v459
      %v543 = vunpack.c.l.b16 %v460
      %v544 = vunpack.c.l.b16 %v461
      %v545 = vunpack.c.l.b16 %v462
      %v546 = vunpack.c.l.b16 %v463
      %v547 = vunpack.c.l.b16 %v464
      %v548 = vunpack.c.l.b16 %v465
      %v549 = vunpack.c.l.b16 %v466
      %v550 = vunpack.c.l.b16 %v467
      %v551 = vunpack.c.l.b16 %v468
      %v552 = vunpack.c.l.b16 %v469
      %v553 = vunpack.c.l.b16 %v470
      %v554 = vpack.c.b16 %v535, %v534
      %v555 = vpack.c.b16 %v537, %v536
      %v556 = vpack.c.b16 %v539, %v538
      %v557 = vpack.c.b16 %v541, %v540
      %v558 = vpack.c.b16 %v543, %v542
      %v559 = vpack.c.b16 %v545, %v544
      %v560 = vpack.c.b16 %v547, %v546
      %v561 = vpack.c.b16 %v549, %v548
      %v562 = vpack.c.b16 %v551, %v550
      %v563 = vpack.c.b16 %v553, %v552
      %vm573 = vcmask 252928
      %v575 = vsel %vm573, %v503, 0
      %v578 = vsel %vm573, %v505, 0
      %v581 = vsel %vm573, %v507, 0
      %v584 = vsel %vm573, %v509, 0
      %vm586 = vcmask 1046528
      %vm587 = vcmask 1047552
      %v588 = vsel %vm586, 4294967295, 65535
      %v589 = vsel %vm587, %v588, 0
      %v591 = vand.u32 %v563, %v589
      %593 = vmatprep.subr.bf16.mxu0 0
      %594 = vmatpush1.bf16.msra.mxu0 %v554
      %595 = vmatprep.subr.bf16.mxu0 0
      %596 = vmatpush1.bf16.msra.mxu0 %v555
      %597 = vmatprep.subr.bf16.mxu0 0
      %598 = vmatpush1.bf16.msra.mxu0 %v556
      %599 = vmatprep.subr.bf16.mxu0 0
      %600 = vmatpush1.bf16.msra.mxu0 %v557
      %601 = vmatprep.subr.bf16.mxu0 0
      %602 = vmatpush1.bf16.msra.mxu0 %v558
      %603 = vmatprep.subr.bf16.mxu0 0
      %604 = vmatpush1.bf16.msra.mxu0 %v559
      %605 = vmatprep.subr.bf16.mxu0 0
      %606 = vmatpush1.bf16.msra.mxu0 %v560
      %607 = vmatprep.subr.bf16.mxu0 0
      %608 = vmatpush1.bf16.msra.mxu0 %v561
      %609 = vmatprep.subr.bf16.mxu0 0
      %610 = vmatpush1.bf16.msra.mxu0 %v562
      %611 = vmatprep.subr.bf16.mxu0 0
      %612 = vmatpush1.bf16.msra.mxu0 %v591
      %613 = vmatprep.subr.bf16.mxu0 0
      %614 = vmatpush1.bf16.msra.mxu0 0
      %615 = vmatprep.subr.bf16.mxu0 0
      %616 = vmatpush1.bf16.msra.mxu0 0
      %617 = vmatprep.subr.bf16.mxu0 0
      %618 = vmatpush1.bf16.msra.mxu0 0
      %619 = vmatprep.subr.bf16.mxu0 0
      %620 = vmatpush1.bf16.msra.mxu0 0
      %621 = vmatprep.subr.bf16.mxu0 0
      %622 = vmatpush1.bf16.msra.mxu0 0
      %623 = vmatprep.subr.bf16.mxu0 0
      %624 = vmatpush1.bf16.msra.mxu0 0
      %625 = vmatprep.mubr.bf16.mxu0 %v575
      %626 = vmatmul.mubr.bf16.gmra.mrb[0].mxu0 %v502
      %v627 = vpop.f32.mrb[0].mxu0
      %v628 = vadd.f32 %v476, %v627
      %v629 = vpop.f32.mrb[0].mxu0
      %v630 = vpop.f32.mrb[0].mxu0
      %v631 = vadd.f32 %v476, %v630
      %v632 = vpop.f32.mrb[0].mxu0
      %633 = vmatprep.mubr.bf16.mxu0 %v578
      %634 = vmatmul.mubr.bf16.gmra.mrb[0].mxu0 %v504
      %v635 = vpop.f32.mrb[0].mxu0
      %v636 = vadd.f32 %v476, %v635
      %v637 = vpop.f32.mrb[0].mxu0
      %v638 = vpop.f32.mrb[0].mxu0
      %v639 = vadd.f32 %v476, %v638
      %v640 = vpop.f32.mrb[0].mxu0
      %641 = vmatprep.mubr.bf16.mxu0 %v581
      %642 = vmatmul.mubr.bf16.gmra.mrb[0].mxu0 %v506
      %v643 = vpop.f32.mrb[0].mxu0
      %v644 = vadd.f32 %v476, %v643
      %v645 = vpop.f32.mrb[0].mxu0
      %v646 = vpop.f32.mrb[0].mxu0
      %v647 = vadd.f32 %v476, %v646
      %v648 = vpop.f32.mrb[0].mxu0
      %649 = vmatprep.mubr.bf16.mxu0 %v584
      %650 = vmatmul.mubr.bf16.gmra.mrb[0].mxu0 %v508
      %v651 = vpop.f32.mrb[0].mxu0
      %v652 = vadd.f32 %v476, %v651
      %v653 = vpop.f32.mrb[0].mxu0
      %v654 = vpop.f32.mrb[0].mxu0
      %v655 = vadd.f32 %v476, %v654
      %v656 = vpop.f32.mrb[0].mxu0
      %657 = vdwg.mxu0
      %v658 = vmax.f32 %v628, 0.0
      %v659 = vmax.f32 %v631, 0.0
      %v660 = vmax.f32 %v636, 0.0
      %v661 = vmax.f32 %v639, 0.0
      %v662 = vmax.f32 %v644, 0.0
      %v663 = vmax.f32 %v647, 0.0
      %v664 = vmax.f32 %v652, 0.0
      %v665 = vmax.f32 %v655, 0.0
      %v666 = vpack.c.bf16 %v659, %v658
      %v667 = vpack.c.bf16 %v661, %v660
      %v668 = vpack.c.bf16 %v663, %v662
      %v669 = vpack.c.bf16 %v665, %v664
      %v670 = vld [vmem:[%s4] sm:$0xf]
      %v671 = vld [vmem:[%s4 + $0x4] sm:$0xf]
      %v672 = vld [vmem:[%s4 + $0x8] sm:$0xf]
      %v673 = vld [vmem:[%s4 + $0xc] sm:$0xf]
      %v674 = vld [vmem:[%s4 + $0x10] sm:$0xf]
      %v675 = vld [vmem:[%s4 + $0x14] sm:$0xf]
      %v676 = vld [vmem:[%s4 + $0x18] sm:$0xf]
      %v677 = vld [vmem:[%s4 + $0x1c] sm:$0xf]
      %v686 = vunpack.c.l.b16 %v670
      %v687 = vunpack.c.l.b16 %v671
      %v688 = vunpack.c.l.b16 %v672
      %v689 = vunpack.c.l.b16 %v673
      %v690 = vunpack.c.l.b16 %v674
      %v691 = vunpack.c.l.b16 %v675
      %v692 = vunpack.c.l.b16 %v676
      %v693 = vunpack.c.l.b16 %v677
      %v694 = vpack.c.b16 %v687, %v686
      %v695 = vpack.c.b16 %v689, %v688
      %v696 = vpack.c.b16 %v691, %v690
      %v697 = vpack.c.b16 %v693, %v692
      %vm702 = vcmask 523264
      %v704 = vsel %vm702, %v666, 0
      %v707 = vsel %vm702, %v667, 0
      %v710 = vsel %vm702, %v668, 0
      %v713 = vsel %vm702, %v669, 0
      %715 = vmatprep.subr.bf16.mxu0 0
      %716 = vmatpush1.bf16.msra.mxu0 %v694
      %717 = vmatprep.subr.bf16.mxu0 0
      %718 = vmatpush1.bf16.msra.mxu0 %v695
      %719 = vmatprep.subr.bf16.mxu0 0
      %720 = vmatpush1.bf16.msra.mxu0 %v696
      %721 = vmatprep.subr.bf16.mxu0 0
      %722 = vmatpush1.bf16.msra.mxu0 %v697
      %723 = vmatprep.subr.bf16.mxu0 0
      %724 = vmatpush1.bf16.msra.mxu0 0
      %725 = vmatprep.subr.bf16.mxu0 0
      %726 = vmatpush1.bf16.msra.mxu0 0
      %727 = vmatprep.subr.bf16.mxu0 0
      %728 = vmatpush1.bf16.msra.mxu0 0
      %729 = vmatprep.subr.bf16.mxu0 0
      %730 = vmatpush1.bf16.msra.mxu0 0
      %731 = vmatprep.subr.bf16.mxu0 0
      %732 = vmatpush1.bf16.msra.mxu0 0
      %733 = vmatprep.subr.bf16.mxu0 0
      %734 = vmatpush1.bf16.msra.mxu0 0
      %735 = vmatprep.subr.bf16.mxu0 0
      %736 = vmatpush1.bf16.msra.mxu0 0
      %737 = vmatprep.subr.bf16.mxu0 0
      %738 = vmatpush1.bf16.msra.mxu0 0
      %739 = vmatprep.subr.bf16.mxu0 0
      %740 = vmatpush1.bf16.msra.mxu0 0
      %741 = vmatprep.subr.bf16.mxu0 0
      %742 = vmatpush1.bf16.msra.mxu0 0
      %743 = vmatprep.subr.bf16.mxu0 0
      %744 = vmatpush1.bf16.msra.mxu0 0
      %745 = vmatprep.subr.bf16.mxu0 0
      %746 = vmatpush1.bf16.msra.mxu0 0
      %747 = vmatprep.mubr.bf16.mxu0 0
      %748 = vmatmul.mubr.bf16.gmra.mrb[0].mxu0 %v704
      %v749 = vpop.f32.mrb[0].mxu0
      %v750 = vadd.f32 0.0, %v749
      %v751 = vpop.f32.mrb[0].mxu0
      %v752 = vpop.f32.mrb[0].mxu0
      %v753 = vadd.f32 0.0, %v752
      %v754 = vpop.f32.mrb[0].mxu0
      %755 = vmatprep.mubr.bf16.mxu0 0
      %756 = vmatmul.mubr.bf16.gmra.mrb[0].mxu0 %v707
      %v757 = vpop.f32.mrb[0].mxu0
      %v758 = vadd.f32 0.0, %v757
      %v759 = vpop.f32.mrb[0].mxu0
      %v760 = vpop.f32.mrb[0].mxu0
      %v761 = vadd.f32 0.0, %v760
      %v762 = vpop.f32.mrb[0].mxu0
      %763 = vmatprep.mubr.bf16.mxu0 0
      %764 = vmatmul.mubr.bf16.gmra.mrb[0].mxu0 %v710
      %v765 = vpop.f32.mrb[0].mxu0
      %v766 = vadd.f32 0.0, %v765
      %v767 = vpop.f32.mrb[0].mxu0
      %v768 = vpop.f32.mrb[0].mxu0
      %v769 = vadd.f32 0.0, %v768
      %v770 = vpop.f32.mrb[0].mxu0
      %771 = vmatprep.mubr.bf16.mxu0 0
      %772 = vmatmul.mubr.bf16.gmra.mrb[0].mxu0 %v713
      %v773 = vpop.f32.mrb[0].mxu0
      %v774 = vadd.f32 0.0, %v773
      %v775 = vpop.f32.mrb[0].mxu0
      %v776 = vpop.f32.mrb[0].mxu0
      %v777 = vadd.f32 0.0, %v776
      %v778 = vpop.f32.mrb[0].mxu0
      %779 = vdwg.mxu0
      %v780 = vlaneseq
      %v781 = vand.u32 %v780, 127
      %vm782 = vcmp.lt.s32.totalorder %v781, 32
      %v783 = vsel %vm782, %v750, 0.0
      %v784 = vsel %vm782, %v753, 0.0
      %v785 = vsel %vm782, %v758, 0.0
      %v786 = vsel %vm782, %v761, 0.0
      %v787 = vsel %vm782, %v766, 0.0
      %v788 = vsel %vm782, %v769, 0.0
      %v789 = vsel %vm782, %v774, 0.0
      %v790 = vsel %vm782, %v777, 0.0
      %vm791 = vcmp.ge.s32.totalorder %v781, 32
      %v792 = vsel %vm791, %v750, 0.0
      %v793 = vsel %vm791, %v753, 0.0
      %v794 = vsel %vm791, %v758, 0.0
      %v795 = vsel %vm791, %v761, 0.0
      %v796 = vsel %vm791, %v766, 0.0
      %v797 = vsel %vm791, %v769, 0.0
      %v798 = vsel %vm791, %v774, 0.0
      %v799 = vsel %vm791, %v777, 0.0
      %v800 = vpack.c.bf16 %v784, %v783
      %v801 = vpack.c.bf16 %v786, %v785
      %v802 = vpack.c.bf16 %v788, %v787
      %v803 = vpack.c.bf16 %v790, %v789
      %v804 = vpack.c.bf16 %v793, %v792
      %v805 = vpack.c.bf16 %v795, %v794
      %v806 = vpack.c.bf16 %v797, %v796
      %v807 = vpack.c.bf16 %v799, %v798
      %v808 = vld [vmem:[%s5] sm:$0x1]
      %v810 = vlaneseq
      %v811 = vshrl.u32 %v810, 7
      %v812 = vsub.s32 0, %v811
      %v813 = vrot.slane %v808, %v812
      %v823 = vunpack.c.l.b16 %v443
      %v824 = vunpack.c.l.b16 %v444
      %v825 = vunpack.c.l.b16 %v445
      %v826 = vunpack.c.l.b16 %v446
      %v827 = vunpack.c.l.b16 %v447
      %v828 = vunpack.c.l.b16 %v448
      %v829 = vunpack.c.l.b16 %v449
      %v830 = vunpack.c.l.b16 %v450
      %v831 = vpack.c.b16 %v824, %v823
      %v832 = vpack.c.b16 %v826, %v825
      %v833 = vpack.c.b16 %v828, %v827
      %v834 = vpack.c.b16 %v830, %v829
      %839 = vmatprep.subr.bf16.mxu0 0
      %840 = vmatpush1.bf16.msra.mxu0 %v800
      %841 = vmatprep.subr.bf16.mxu0 0
      %842 = vmatpush1.bf16.msra.mxu0 %v801
      %843 = vmatprep.subr.bf16.mxu0 0
      %844 = vmatpush1.bf16.msra.mxu0 %v802
      %845 = vmatprep.subr.bf16.mxu0 0
      %846 = vmatpush1.bf16.msra.mxu0 %v803
      %847 = vmatprep.subr.bf16.mxu0 0
      %848 = vmatpush1.bf16.msra.mxu0 %v804
      %849 = vmatprep.subr.bf16.mxu0 0
      %850 = vmatpush1.bf16.msra.mxu0 %v805
      %851 = vmatprep.subr.bf16.mxu0 0
      %852 = vmatpush1.bf16.msra.mxu0 %v806
      %853 = vmatprep.subr.bf16.mxu0 0
      %854 = vmatpush1.bf16.msra.mxu0 %v807
      %855 = vmatprep.subr.bf16.mxu0 0
      %856 = vmatpush1.bf16.msra.mxu0 0
      %857 = vmatprep.subr.bf16.mxu0 0
      %858 = vmatpush1.bf16.msra.mxu0 0
      %859 = vmatprep.subr.bf16.mxu0 0
      %860 = vmatpush1.bf16.msra.mxu0 0
      %861 = vmatprep.subr.bf16.mxu0 0
      %862 = vmatpush1.bf16.msra.mxu0 0
      %863 = vmatprep.subr.bf16.mxu0 0
      %864 = vmatpush1.bf16.msra.mxu0 0
      %865 = vmatprep.subr.bf16.mxu0 0
      %866 = vmatpush1.bf16.msra.mxu0 0
      %867 = vmatprep.subr.bf16.mxu0 0
      %868 = vmatpush1.bf16.msra.mxu0 0
      %869 = vmatprep.subr.bf16.mxu0 0
      %870 = vmatpush1.bf16.msra.mxu0 0
      %871 = vmatprep.mubr.bf16.mxu0 0
      %872 = vmatmul.mubr.bf16.gmra.mrb[0].mxu0 %v831
      %v873 = vpop.f32.mrb[0].mxu0
      %v874 = vadd.f32 %v813, %v873
      %v875 = vpop.f32.mrb[0].mxu0
      %v876 = vpop.f32.mrb[0].mxu0
      %v877 = vadd.f32 %v813, %v876
      %v878 = vpop.f32.mrb[0].mxu0
      %879 = vmatprep.mubr.bf16.mxu0 0
      %880 = vmatmul.mubr.bf16.gmra.mrb[0].mxu0 %v832
      %v881 = vpop.f32.mrb[0].mxu0
      %v882 = vadd.f32 %v813, %v881
      %v883 = vpop.f32.mrb[0].mxu0
      %v884 = vpop.f32.mrb[0].mxu0
      %v885 = vadd.f32 %v813, %v884
      %v886 = vpop.f32.mrb[0].mxu0
      %887 = vmatprep.mubr.bf16.mxu0 0
      %888 = vmatmul.mubr.bf16.gmra.mrb[0].mxu0 %v833
      %v889 = vpop.f32.mrb[0].mxu0
      %v890 = vadd.f32 %v813, %v889
      %v891 = vpop.f32.mrb[0].mxu0
      %v892 = vpop.f32.mrb[0].mxu0
      %v893 = vadd.f32 %v813, %v892
      %v894 = vpop.f32.mrb[0].mxu0
      %895 = vmatprep.mubr.bf16.mxu0 0
      %896 = vmatmul.mubr.bf16.gmra.mrb[0].mxu0 %v834
      %v897 = vpop.f32.mrb[0].mxu0
      %v898 = vadd.f32 %v813, %v897
      %v899 = vpop.f32.mrb[0].mxu0
      %v900 = vpop.f32.mrb[0].mxu0
      %v901 = vadd.f32 %v813, %v900
      %v902 = vpop.f32.mrb[0].mxu0
      %903 = vdwg.mxu0
      %v904 = vmax.f32 %v874, 0.0
      %v905 = vmax.f32 %v877, 0.0
      %v906 = vmax.f32 %v882, 0.0
      %v907 = vmax.f32 %v885, 0.0
      %v908 = vmax.f32 %v890, 0.0
      %v909 = vmax.f32 %v893, 0.0
      %v910 = vmax.f32 %v898, 0.0
      %v911 = vmax.f32 %v901, 0.0
      %v912 = vpack.c.bf16 %v905, %v904
      %v913 = vpack.c.bf16 %v907, %v906
      %v914 = vpack.c.bf16 %v909, %v908
      %v915 = vpack.c.bf16 %v911, %v910
      %v916 = vld [vmem:[%s6] sm:$0xf]
      %v917 = vld [vmem:[%s6 + $0x4] sm:$0xf]
      %v918 = vld [vmem:[%s6 + $0x8] sm:$0xf]
      %v919 = vld [vmem:[%s6 + $0xc] sm:$0xf]
      %v920 = vld [vmem:[%s6 + $0x10] sm:$0xf]
      %v921 = vld [vmem:[%s6 + $0x14] sm:$0xf]
      %v922 = vld [vmem:[%s6 + $0x18] sm:$0xf]
      %v923 = vld [vmem:[%s6 + $0x1c] sm:$0xf]
      %v932 = vunpack.c.l.b16 %v916
      %v933 = vunpack.c.l.b16 %v917
      %v934 = vunpack.c.l.b16 %v918
      %v935 = vunpack.c.l.b16 %v919
      %v936 = vunpack.c.l.b16 %v920
      %v937 = vunpack.c.l.b16 %v921
      %v938 = vunpack.c.l.b16 %v922
      %v939 = vunpack.c.l.b16 %v923
      %v940 = vpack.c.b16 %v933, %v932
      %v941 = vpack.c.b16 %v935, %v934
      %v942 = vpack.c.b16 %v937, %v936
      %v943 = vpack.c.b16 %v939, %v938
      %v949 = vsel %vm702, %v912, 0
      %v952 = vsel %vm702, %v913, 0
      %v955 = vsel %vm702, %v914, 0
      %v958 = vsel %vm702, %v915, 0
      %960 = vmatprep.subr.bf16.mxu0 0
      %961 = vmatpush1.bf16.msra.mxu0 %v940
      %962 = vmatprep.subr.bf16.mxu0 0
      %963 = vmatpush1.bf16.msra.mxu0 %v941
      %964 = vmatprep.subr.bf16.mxu0 0
      %965 = vmatpush1.bf16.msra.mxu0 %v942
      %966 = vmatprep.subr.bf16.mxu0 0
      %967 = vmatpush1.bf16.msra.mxu0 %v943
      %968 = vmatprep.subr.bf16.mxu0 0
      %969 = vmatpush1.bf16.msra.mxu0 0
      %970 = vmatprep.subr.bf16.mxu0 0
      %971 = vmatpush1.bf16.msra.mxu0 0
      %972 = vmatprep.subr.bf16.mxu0 0
      %973 = vmatpush1.bf16.msra.mxu0 0
      %974 = vmatprep.subr.bf16.mxu0 0
      %975 = vmatpush1.bf16.msra.mxu0 0
      %976 = vmatprep.subr.bf16.mxu0 0
      %977 = vmatpush1.bf16.msra.mxu0 0
      %978 = vmatprep.subr.bf16.mxu0 0
      %979 = vmatpush1.bf16.msra.mxu0 0
      %980 = vmatprep.subr.bf16.mxu0 0
      %981 = vmatpush1.bf16.msra.mxu0 0
      %982 = vmatprep.subr.bf16.mxu0 0
      %983 = vmatpush1.bf16.msra.mxu0 0
      %984 = vmatprep.subr.bf16.mxu0 0
      %985 = vmatpush1.bf16.msra.mxu0 0
      %986 = vmatprep.subr.bf16.mxu0 0
      %987 = vmatpush1.bf16.msra.mxu0 0
      %988 = vmatprep.subr.bf16.mxu0 0
      %989 = vmatpush1.bf16.msra.mxu0 0
      %990 = vmatprep.subr.bf16.mxu0 0
      %991 = vmatpush1.bf16.msra.mxu0 0
      %992 = vmatprep.mubr.bf16.mxu0 0
      %993 = vmatmul.mubr.bf16.gmra.mrb[0].mxu0 %v949
      %v994 = vpop.f32.mrb[0].mxu0
      %v995 = vadd.f32 0.0, %v994
      %v996 = vpop.f32.mrb[0].mxu0
      %v997 = vpop.f32.mrb[0].mxu0
      %v998 = vadd.f32 0.0, %v997
      %v999 = vpop.f32.mrb[0].mxu0
      %1000 = vmatprep.mubr.bf16.mxu0 0
      %1001 = vmatmul.mubr.bf16.gmra.mrb[0].mxu0 %v952
      %v1002 = vpop.f32.mrb[0].mxu0
      %v1003 = vadd.f32 0.0, %v1002
      %v1004 = vpop.f32.mrb[0].mxu0
      %v1005 = vpop.f32.mrb[0].mxu0
      %v1006 = vadd.f32 0.0, %v1005
      %v1007 = vpop.f32.mrb[0].mxu0
      %1008 = vmatprep.mubr.bf16.mxu0 0
      %1009 = vmatmul.mubr.bf16.gmra.mrb[0].mxu0 %v955
      %v1010 = vpop.f32.mrb[0].mxu0
      %v1011 = vadd.f32 0.0, %v1010
      %v1012 = vpop.f32.mrb[0].mxu0
      %v1013 = vpop.f32.mrb[0].mxu0
      %v1014 = vadd.f32 0.0, %v1013
      %v1015 = vpop.f32.mrb[0].mxu0
      %1016 = vmatprep.mubr.bf16.mxu0 0
      %1017 = vmatmul.mubr.bf16.gmra.mrb[0].mxu0 %v958
      %v1018 = vpop.f32.mrb[0].mxu0
      %v1019 = vadd.f32 0.0, %v1018
      %v1020 = vpop.f32.mrb[0].mxu0
      %v1021 = vpop.f32.mrb[0].mxu0
      %v1022 = vadd.f32 0.0, %v1021
      %v1023 = vpop.f32.mrb[0].mxu0
      %1024 = vdwg.mxu0
      %vm1025 = vcmp.lt.s32.totalorder %v781, 33
      %v1026 = vsel %vm1025, %v995, 0.0
      %v1027 = vsel %vm1025, %v998, 0.0
      %v1028 = vsel %vm1025, %v1003, 0.0
      %v1029 = vsel %vm1025, %v1006, 0.0
      %v1030 = vsel %vm1025, %v1011, 0.0
      %v1031 = vsel %vm1025, %v1014, 0.0
      %v1032 = vsel %vm1025, %v1019, 0.0
      %v1033 = vsel %vm1025, %v1022, 0.0
      %vm1034 = vcmp.ge.s32.totalorder %v781, 33
      %v1035 = vsel %vm1034, %v995, 0.0
      %v1036 = vsel %vm1034, %v998, 0.0
      %v1037 = vsel %vm1034, %v1003, 0.0
      %v1038 = vsel %vm1034, %v1006, 0.0
      %v1039 = vsel %vm1034, %v1011, 0.0
      %v1040 = vsel %vm1034, %v1014, 0.0
      %v1041 = vsel %vm1034, %v1019, 0.0
      %v1042 = vsel %vm1034, %v1022, 0.0
      %v1043 = vpack.c.bf16 %v1027, %v1026
      %v1044 = vpack.c.bf16 %v1029, %v1028
      %v1045 = vpack.c.bf16 %v1031, %v1030
      %v1046 = vpack.c.bf16 %v1033, %v1032
      %v1047 = vpack.c.bf16 %v1036, %v1035
      %v1048 = vpack.c.bf16 %v1038, %v1037
      %v1049 = vpack.c.bf16 %v1040, %v1039
      %v1050 = vpack.c.bf16 %v1042, %v1041
      %v1051 = vld [vmem:[%s7] sm:$0x1]
      %v1053 = vlaneseq
      %v1054 = vshrl.u32 %v1053, 7
      %v1055 = vsub.s32 0, %v1054
      %v1056 = vrot.slane %v1051, %v1055
      %1058 = vmatprep.subr.bf16.mxu0 0
      %1059 = vmatpush1.bf16.msra.mxu0 %v1043
      %1060 = vmatprep.subr.bf16.mxu0 0
      %1061 = vmatpush1.bf16.msra.mxu0 %v1044
      %1062 = vmatprep.subr.bf16.mxu0 0
      %1063 = vmatpush1.bf16.msra.mxu0 %v1045
      %1064 = vmatprep.subr.bf16.mxu0 0
      %1065 = vmatpush1.bf16.msra.mxu0 %v1046
      %1066 = vmatprep.subr.bf16.mxu0 0
      %1067 = vmatpush1.bf16.msra.mxu0 %v1047
      %1068 = vmatprep.subr.bf16.mxu0 0
      %1069 = vmatpush1.bf16.msra.mxu0 %v1048
      %1070 = vmatprep.subr.bf16.mxu0 0
      %1071 = vmatpush1.bf16.msra.mxu0 %v1049
      %1072 = vmatprep.subr.bf16.mxu0 0
      %1073 = vmatpush1.bf16.msra.mxu0 %v1050
      %1074 = vmatprep.subr.bf16.mxu0 0
      %1075 = vmatpush1.bf16.msra.mxu0 0
      %1076 = vmatprep.subr.bf16.mxu0 0
      %1077 = vmatpush1.bf16.msra.mxu0 0
      %1078 = vmatprep.subr.bf16.mxu0 0
      %1079 = vmatpush1.bf16.msra.mxu0 0
      %1080 = vmatprep.subr.bf16.mxu0 0
      %1081 = vmatpush1.bf16.msra.mxu0 0
      %1082 = vmatprep.subr.bf16.mxu0 0
      %1083 = vmatpush1.bf16.msra.mxu0 0
      %1084 = vmatprep.subr.bf16.mxu0 0
      %1085 = vmatpush1.bf16.msra.mxu0 0
      %1086 = vmatprep.subr.bf16.mxu0 0
      %1087 = vmatpush1.bf16.msra.mxu0 0
      %1088 = vmatprep.subr.bf16.mxu0 0
      %1089 = vmatpush1.bf16.msra.mxu0 0
      %1090 = vmatprep.mubr.bf16.mxu0 0
      %1091 = vmatmul.mubr.bf16.gmra.mrb[0].mxu0 %v831
      %v1092 = vpop.f32.mrb[0].mxu0
      %v1093 = vadd.f32 %v1056, %v1092
      %v1094 = vpop.f32.mrb[0].mxu0
      %v1095 = vpop.f32.mrb[0].mxu0
      %v1096 = vadd.f32 %v1056, %v1095
      %v1097 = vpop.f32.mrb[0].mxu0
      %1098 = vmatprep.mubr.bf16.mxu0 0
      %1099 = vmatmul.mubr.bf16.gmra.mrb[0].mxu0 %v832
      %v1100 = vpop.f32.mrb[0].mxu0
      %v1101 = vadd.f32 %v1056, %v1100
      %v1102 = vpop.f32.mrb[0].mxu0
      %v1103 = vpop.f32.mrb[0].mxu0
      %v1104 = vadd.f32 %v1056, %v1103
      %v1105 = vpop.f32.mrb[0].mxu0
      %1106 = vmatprep.mubr.bf16.mxu0 0
      %1107 = vmatmul.mubr.bf16.gmra.mrb[0].mxu0 %v833
      %v1108 = vpop.f32.mrb[0].mxu0
      %v1109 = vadd.f32 %v1056, %v1108
      %v1110 = vpop.f32.mrb[0].mxu0
      %v1111 = vpop.f32.mrb[0].mxu0
      %v1112 = vadd.f32 %v1056, %v1111
      %v1113 = vpop.f32.mrb[0].mxu0
      %1114 = vmatprep.mubr.bf16.mxu0 0
      %1115 = vmatmul.mubr.bf16.gmra.mrb[0].mxu0 %v834
      %v1116 = vpop.f32.mrb[0].mxu0
      %v1117 = vadd.f32 %v1056, %v1116
      %v1118 = vpop.f32.mrb[0].mxu0
      %v1119 = vpop.f32.mrb[0].mxu0
      %v1120 = vadd.f32 %v1056, %v1119
      %v1121 = vpop.f32.mrb[0].mxu0
      %1122 = vdwg.mxu0
      %v1123 = vmax.f32 %v1093, 0.0
      %v1124 = vmax.f32 %v1096, 0.0
      %v1125 = vmax.f32 %v1101, 0.0
      %v1126 = vmax.f32 %v1104, 0.0
      %v1127 = vmax.f32 %v1109, 0.0
      %v1128 = vmax.f32 %v1112, 0.0
      %v1129 = vmax.f32 %v1117, 0.0
      %v1130 = vmax.f32 %v1120, 0.0
      %v1131 = vpack.c.bf16 %v1124, %v1123
      %v1132 = vpack.c.bf16 %v1126, %v1125
      %v1133 = vpack.c.bf16 %v1128, %v1127
      %v1134 = vpack.c.bf16 %v1130, %v1129
      %v1135 = vld [vmem:[%s8] sm:$0xf]
      %v1136 = vld [vmem:[%s8 + $0x4] sm:$0xf]
      %v1137 = vld [vmem:[%s8 + $0x8] sm:$0xf]
      %v1138 = vld [vmem:[%s8 + $0xc] sm:$0xf]
      %v1139 = vld [vmem:[%s8 + $0x10] sm:$0xf]
      %v1140 = vld [vmem:[%s8 + $0x14] sm:$0x3]
      %v1141 = vld [vmem:[%s9] sm:$0x1]
      %v1143 = vlaneseq
      %v1144 = vshrl.u32 %v1143, 7
      %v1145 = vsub.s32 0, %v1144
      %v1146 = vrot.slane %v1141, %v1145
      %v1154 = vunpack.c.l.b16 %v1135
      %v1155 = vunpack.c.l.b16 %v1136
      %v1156 = vunpack.c.l.b16 %v1137
      %v1157 = vunpack.c.l.b16 %v1138
      %v1158 = vunpack.c.l.b16 %v1139
      %v1159 = vunpack.c.l.b16 %v1140
      %v1160 = vpack.c.b16 %v1155, %v1154
      %v1161 = vpack.c.b16 %v1157, %v1156
      %v1162 = vpack.c.b16 %v1159, %v1158
      %vm1165 = vcmask 359424
      %v1167 = vsel %vm1165, %v1131, 0
      %v1170 = vsel %vm1165, %v1132, 0
      %v1173 = vsel %vm1165, %v1133, 0
      %v1176 = vsel %vm1165, %v1134, 0
      %vm1178 = vcmask 1045504
      %v1180 = vsel %vm1178, %v1162, 0
      %1182 = vmatprep.subr.bf16.mxu0 0
      %1183 = vmatpush1.bf16.msra.mxu0 %v1160
      %1184 = vmatprep.subr.bf16.mxu0 0
      %1185 = vmatpush1.bf16.msra.mxu0 %v1161
      %1186 = vmatprep.subr.bf16.mxu0 0
      %1187 = vmatpush1.bf16.msra.mxu0 %v1180
      %1188 = vmatprep.subr.bf16.mxu0 0
      %1189 = vmatpush1.bf16.msra.mxu0 0
      %1190 = vmatprep.subr.bf16.mxu0 0
      %1191 = vmatpush1.bf16.msra.mxu0 0
      %1192 = vmatprep.subr.bf16.mxu0 0
      %1193 = vmatpush1.bf16.msra.mxu0 0
      %1194 = vmatprep.subr.bf16.mxu0 0
      %1195 = vmatpush1.bf16.msra.mxu0 0
      %1196 = vmatprep.subr.bf16.mxu0 0
      %1197 = vmatpush1.bf16.msra.mxu0 0
      %1198 = vmatprep.subr.bf16.mxu0 0
      %1199 = vmatpush1.bf16.msra.mxu0 0
      %1200 = vmatprep.subr.bf16.mxu0 0
      %1201 = vmatpush1.bf16.msra.mxu0 0
      %1202 = vmatprep.subr.bf16.mxu0 0
      %1203 = vmatpush1.bf16.msra.mxu0 0
      %1204 = vmatprep.subr.bf16.mxu0 0
      %1205 = vmatpush1.bf16.msra.mxu0 0
      %1206 = vmatprep.subr.bf16.mxu0 0
      %1207 = vmatpush1.bf16.msra.mxu0 0
      %1208 = vmatprep.subr.bf16.mxu0 0
      %1209 = vmatpush1.bf16.msra.mxu0 0
      %1210 = vmatprep.subr.bf16.mxu0 0
      %1211 = vmatpush1.bf16.msra.mxu0 0
      %1212 = vmatprep.subr.bf16.mxu0 0
      %1213 = vmatpush1.bf16.msra.mxu0 0
      %1214 = vmatprep.mubr.bf16.mxu0 0
      %1215 = vmatmul.mubr.bf16.gmra.mrb[0].mxu0 %v1167
      %v1216 = vpop.f32.mrb[0].mxu0
      %v1217 = vadd.f32 %v1146, %v1216
      %v1218 = vpop.f32.mrb[0].mxu0
      %v1219 = vpop.f32.mrb[0].mxu0
      %v1220 = vadd.f32 %v1146, %v1219
      %v1221 = vpop.f32.mrb[0].mxu0
      %1222 = vmatprep.mubr.bf16.mxu0 0
      %1223 = vmatmul.mubr.bf16.gmra.mrb[0].mxu0 %v1170
      %v1224 = vpop.f32.mrb[0].mxu0
      %v1225 = vadd.f32 %v1146, %v1224
      %v1226 = vpop.f32.mrb[0].mxu0
      %v1227 = vpop.f32.mrb[0].mxu0
      %v1228 = vadd.f32 %v1146, %v1227
      %v1229 = vpop.f32.mrb[0].mxu0
      %1230 = vmatprep.mubr.bf16.mxu0 0
      %1231 = vmatmul.mubr.bf16.gmra.mrb[0].mxu0 %v1173
      %v1232 = vpop.f32.mrb[0].mxu0
      %v1233 = vadd.f32 %v1146, %v1232
      %v1234 = vpop.f32.mrb[0].mxu0
      %v1235 = vpop.f32.mrb[0].mxu0
      %v1236 = vadd.f32 %v1146, %v1235
      %v1237 = vpop.f32.mrb[0].mxu0
      %1238 = vmatprep.mubr.bf16.mxu0 0
      %1239 = vmatmul.mubr.bf16.gmra.mrb[0].mxu0 %v1176
      %v1240 = vpop.f32.mrb[0].mxu0
      %v1241 = vadd.f32 %v1146, %v1240
      %v1242 = vpop.f32.mrb[0].mxu0
      %v1243 = vpop.f32.mrb[0].mxu0
      %v1244 = vadd.f32 %v1146, %v1243
      %v1245 = vpop.f32.mrb[0].mxu0
      %1246 = vdwg.mxu0
      %v1247 = vmax.f32 %v1217, 0.0
      %v1248 = vmax.f32 %v1220, 0.0
      %v1249 = vmax.f32 %v1225, 0.0
      %v1250 = vmax.f32 %v1228, 0.0
      %v1251 = vmax.f32 %v1233, 0.0
      %v1252 = vmax.f32 %v1236, 0.0
      %v1253 = vmax.f32 %v1241, 0.0
      %v1254 = vmax.f32 %v1244, 0.0
      %v1255 = vpack.c.bf16 %v1248, %v1247
      %v1256 = vpack.c.bf16 %v1250, %v1249
      %v1257 = vpack.c.bf16 %v1252, %v1251
      %v1258 = vpack.c.bf16 %v1254, %v1253
      %v1259 = vld [vmem:[%s10] sm:$0xf]
      %v1260 = vld [vmem:[%s10 + $0x4] sm:$0xf]
      %v1261 = vld [vmem:[%s10 + $0x8] sm:$0xf]
      %v1262 = vld [vmem:[%s10 + $0xc] sm:$0xf]
      %v1263 = vld [vmem:[%s10 + $0x10] sm:$0x1]
      %v1264 = vld [vmem:[%s11] sm:$0x1]
      %v1266 = vlaneseq
      %v1267 = vshrl.u32 %v1266, 7
      %v1268 = vsub.s32 0, %v1267
      %v1269 = vrot.slane %v1264, %v1268
      %v1276 = vunpack.c.l.b16 %v1259
      %v1277 = vunpack.c.l.b16 %v1260
      %v1278 = vunpack.c.l.b16 %v1261
      %v1279 = vunpack.c.l.b16 %v1262
      %v1280 = vunpack.c.l.b16 %v1263
      %v1281 = vpack.c.b16 %v1277, %v1276
      %v1282 = vpack.c.b16 %v1279, %v1278
      %v1283 = vpack.c.b16 %v1280, %v1280
      %vm1286 = vcmask 269312
      %v1288 = vsel %vm1286, %v1255, 0
      %v1291 = vsel %vm1286, %v1256, 0
      %v1294 = vsel %vm1286, %v1257, 0
      %v1297 = vsel %vm1286, %v1258, 0
      %vm1299 = vcmask 1040384
      %v1300 = vsel 0, 4294967295, 65535
      %v1301 = vsel %vm1299, %v1300, 0
      %v1303 = vand.u32 %v1283, %v1301
      %1305 = vmatprep.subr.bf16.mxu0 0
      %1306 = vmatpush1.bf16.msra.mxu0 %v1281
      %1307 = vmatprep.subr.bf16.mxu0 0
      %1308 = vmatpush1.bf16.msra.mxu0 %v1282
      %1309 = vmatprep.subr.bf16.mxu0 0
      %1310 = vmatpush1.bf16.msra.mxu0 %v1303
      %1311 = vmatprep.subr.bf16.mxu0 0
      %1312 = vmatpush1.bf16.msra.mxu0 0
      %1313 = vmatprep.subr.bf16.mxu0 0
      %1314 = vmatpush1.bf16.msra.mxu0 0
      %1315 = vmatprep.subr.bf16.mxu0 0
      %1316 = vmatpush1.bf16.msra.mxu0 0
      %1317 = vmatprep.subr.bf16.mxu0 0
      %1318 = vmatpush1.bf16.msra.mxu0 0
      %1319 = vmatprep.subr.bf16.mxu0 0
      %1320 = vmatpush1.bf16.msra.mxu0 0
      %1321 = vmatprep.subr.bf16.mxu0 0
      %1322 = vmatpush1.bf16.msra.mxu0 0
      %1323 = vmatprep.subr.bf16.mxu0 0
      %1324 = vmatpush1.bf16.msra.mxu0 0
      %1325 = vmatprep.subr.bf16.mxu0 0
      %1326 = vmatpush1.bf16.msra.mxu0 0
      %1327 = vmatprep.subr.bf16.mxu0 0
      %1328 = vmatpush1.bf16.msra.mxu0 0
      %1329 = vmatprep.subr.bf16.mxu0 0
      %1330 = vmatpush1.bf16.msra.mxu0 0
      %1331 = vmatprep.subr.bf16.mxu0 0
      %1332 = vmatpush1.bf16.msra.mxu0 0
      %1333 = vmatprep.subr.bf16.mxu0 0
      %1334 = vmatpush1.bf16.msra.mxu0 0
      %1335 = vmatprep.subr.bf16.mxu0 0
      %1336 = vmatpush1.bf16.msra.mxu0 0
      %1337 = vmatprep.mubr.bf16.mxu0 0
      %1338 = vmatmul.mubr.bf16.gmra.mrb[0].mxu0 %v1288
      %v1339 = vpop.f32.mrb[0].mxu0
      %v1340 = vadd.f32 %v1269, %v1339
      %v1341 = vpop.f32.mrb[0].mxu0
      %v1342 = vpop.f32.mrb[0].mxu0
      %v1343 = vadd.f32 %v1269, %v1342
      %v1344 = vpop.f32.mrb[0].mxu0
      %1345 = vmatprep.mubr.bf16.mxu0 0
      %1346 = vmatmul.mubr.bf16.gmra.mrb[0].mxu0 %v1291
      %v1347 = vpop.f32.mrb[0].mxu0
      %v1348 = vadd.f32 %v1269, %v1347
      %v1349 = vpop.f32.mrb[0].mxu0
      %v1350 = vpop.f32.mrb[0].mxu0
      %v1351 = vadd.f32 %v1269, %v1350
      %v1352 = vpop.f32.mrb[0].mxu0
      %1353 = vmatprep.mubr.bf16.mxu0 0
      %1354 = vmatmul.mubr.bf16.gmra.mrb[0].mxu0 %v1294
      %v1355 = vpop.f32.mrb[0].mxu0
      %v1356 = vadd.f32 %v1269, %v1355
      %v1357 = vpop.f32.mrb[0].mxu0
      %v1358 = vpop.f32.mrb[0].mxu0
      %v1359 = vadd.f32 %v1269, %v1358
      %v1360 = vpop.f32.mrb[0].mxu0
      %1361 = vmatprep.mubr.bf16.mxu0 0
      %1362 = vmatmul.mubr.bf16.gmra.mrb[0].mxu0 %v1297
      %v1363 = vpop.f32.mrb[0].mxu0
      %v1364 = vadd.f32 %v1269, %v1363
      %v1365 = vpop.f32.mrb[0].mxu0
      %v1366 = vpop.f32.mrb[0].mxu0
      %v1367 = vadd.f32 %v1269, %v1366
      %v1368 = vpop.f32.mrb[0].mxu0
      %1369 = vdwg.mxu0
      %1370 = vst [vmem:[%s433] sm:$0xff] %v1340
      %1371 = vst [vmem:[%s433 + $0x8] sm:$0xff] %v1343
      %1372 = vst [vmem:[%s433 + $0x10] sm:$0xff] %v1348
      %1373 = vst [vmem:[%s433 + $0x18] sm:$0xff] %v1351
      %1374 = vst [vmem:[%s433 + $0x20] sm:$0xff] %v1356
      %1375 = vst [vmem:[%s433 + $0x28] sm:$0xff] %v1359
      %1376 = vst [vmem:[%s433 + $0x30] sm:$0xff] %v1364
      %1377 = vst [vmem:[%s433 + $0x38] sm:$0xff] %v1367
      %p1378 = scmp.lt.s32.totalorder %s23, 3
      %s1379 = scalar_select %p1378, %s23, 3
      %s1380 = smul.addr %s1379, 8
      %s1381 = smul.addr %s1380, 8
      %s1382 = scalar_lea.vmem %s12, %s1381
      // Predicated region
      $region69: #{snap_gnn_forward.1} parent=67 // pred_check
        %p1383 = pneg %p303
      $region70: #{snap_gnn_forward.1} parent=67 // pred_check_branch
        %1385 = sbr.rel (%p1383) target = $region72
      $region71: #{snap_gnn_forward.1} parent=67 // pred_region
        _
      $region72: #{snap_gnn_forward.1} parent=67 // pred_fallthru
        _
    $region68: #{snap_gnn_forward.1} parent=5 // pred_fallthru
      _
    %p1386 = scmp.le.s32.totalorder 2, %s18
    // Predicated region
    $region73: #{snap_gnn_forward.1} parent=5 // pred_check
      %p1387 = pneg %p1386
    $region74: #{snap_gnn_forward.1} parent=5 // pred_check_branch
      %1389 = sbr.rel (%p1387) target = $region76
    $region75: #{snap_gnn_forward.1} parent=5 // pred_region
      %s1390 = ssub.s32 %s18, 2
      // Predicated region
      $region77: #{snap_gnn_forward.1} parent=75 // pred_check
        %p1391 = pneg %p309
      $region78: #{snap_gnn_forward.1} parent=75 // pred_check_branch
        %1393 = sbr.rel (%p1391) target = $region80
      $region79: #{snap_gnn_forward.1} parent=75 // pred_region
        %p1394 = scmp.lt.s32.totalorder %s24, 3
        %s1395 = scalar_select %p1394, %s24, 3
        %s1396 = smul.addr %s1395, 8
        %s1397 = smul.addr %s1396, 8
        %s1398 = scalar_lea.vmem %s12, %s1397
      $region80: #{snap_gnn_forward.1} parent=75 // pred_fallthru
        _
    $region76: #{snap_gnn_forward.1} parent=5 // pred_fallthru
      _
  $region6: #{snap_gnn_forward.1} parent=0 // loop_footer
    %s22 = sadd.s32 1, %s18
  $region7: #{snap_gnn_forward.1} parent=0 // loop_footer_branch
    %17 = sbr.rel target = $region3
  $region8: #{snap_gnn_forward.1} parent=0 // loop_exit
    _

</llo_original>
